<compile_context>
chip_gen: v7x
topology: tpu7x:2x2x1
jax: 0.10.0
libtpu: 0.0.40
codegen_flags: <defaults>
</compile_context>

<pallas_src>
import functools

import jax
import jax.numpy as jnp
from jax.experimental import pallas as pl
from jax.experimental.pallas import tpu as pltpu


def gat_flash_kernel(xq_ref, xk_ref, a1_ref, a2_ref, c1_ref, c2_ref,
                     o_ref,
                     s2_scratch, m_scratch, l_scratch, acc_scratch, p_scratch,
                     *, num_head, n_valid, block_k, bf16_exp):
    kj = pl.program_id(1)
    block_m = acc_scratch.shape[1]

    @pl.when(kj == 0)
    def _init():
        # "query"-side logits are constant across the column sweep: compute once
        # per row block and cache per head in (BM, 1) layout (same as m/l).
        s2 = (jnp.dot(xq_ref[...], a2_ref[...],
                      preferred_element_type=jnp.float32) + c2_ref[...])   # (BM, H)
        for h in range(num_head):
            s2_scratch[h] = s2[:, h:h + 1]
        m_scratch[...] = jnp.full(m_scratch.shape, -jnp.inf, jnp.float32)
        l_scratch[...] = jnp.zeros(l_scratch.shape, jnp.float32)
        acc_scratch[...] = jnp.zeros(acc_scratch.shape, jnp.float32)

    xk = xk_ref[...]                                                    # (BK, Dp) bf16
    # "key"-side logits for this column block, all heads in one small matmul.
    s1k = jnp.dot(xk, a1_ref[...],
                  preferred_element_type=jnp.float32) + c1_ref[...]     # (BK, H) f32

    # Mask padded (fake) columns ONCE on the (BK, H) logits — before LeakyReLU
    # (0.01 * -1e30 = -1e28 still underflows exp to 0, and stays finite so the
    # running max never goes NaN even for an all-padded block).
    col = kj * block_k + jax.lax.broadcasted_iota(jnp.int32, (block_k, 1), 0)
    s1k = jnp.where(col < n_valid, s1k, -1e30)
    s1k_t = s1k.T                                                       # (H, BK): one relayout for all heads

    alphas = []
    for h in range(num_head):                                           # tiny static head count
        e = s1k_t[h:h + 1, :] + s2_scratch[h]                           # (BM, BK) f32
        e = jnp.maximum(e, 0.01 * e)                                    # LeakyReLU(0.01)

        m_old = m_scratch[h]                                            # (BM, 1)
        m_new = jnp.maximum(m_old, jnp.max(e, axis=1, keepdims=True))
        alpha = jnp.exp(m_old - m_new)
        z = e - m_new
        if bf16_exp:
            # v6e / v7x: bf16 EUP; dominant (near-max) entries have |z| ~ 0 so
            # the bf16 argument rounding barely perturbs the softmax.
            p = jnp.exp(z.astype(jnp.bfloat16))                         # (BM, BK) bf16
            l_scratch[h] = (alpha * l_scratch[h]
                            + jnp.sum(p, axis=1, keepdims=True, dtype=jnp.float32))
        else:
            # v5e and older: no bf16 EUP — keep the exp in f32.
            p_f32 = jnp.exp(z)
            l_scratch[h] = (alpha * l_scratch[h]
                            + jnp.sum(p_f32, axis=1, keepdims=True))
            p = p_f32.astype(jnp.bfloat16)
        m_scratch[h] = m_new
        alphas.append(alpha)
        p_scratch[h * block_m:(h + 1) * block_m, :] = p                 # stage for fused matmul

    # One fused value matmul for all heads: (H*BM, BK) @ (BK, Dp) on the MXU.
    pv = jnp.dot(p_scratch[...], xk, preferred_element_type=jnp.float32)
    for h in range(num_head):
        acc_scratch[h] = (alphas[h] * acc_scratch[h]
                          + pv[h * block_m:(h + 1) * block_m, :])

    @pl.when(kj == pl.num_programs(1) - 1)
    def _finalize():
        out = jnp.zeros(o_ref.shape, jnp.float32)
        for h in range(num_head):
            out = out + acc_scratch[h] * pl.reciprocal(l_scratch[h], approx=True)
        o_ref[...] = (out * (1.0 / num_head)).astype(o_ref.dtype)


def _round_up(v, m):
    return (v + m - 1) // m * m


def _pick_blocks(n, block_m, block_k):
    """Shrink requested blocks so padding stays tight for small graphs, keep
    block_m | block_k (so n_pad only needs to be a multiple of block_k), and
    try to keep at least 2 row blocks for v7x megacore when there is work."""
    n128 = _round_up(n, 128)
    bk = min(block_k, n128)
    bm = min(block_m, bk)
    while bk % bm:                       # defensive: force bm | bk, bm % 8 == 0
        bm -= 8
    n_pad = _round_up(n, bk)
    if n_pad // bm < 2 and bm >= 256:    # v7x: "parallel" row axis feeds both TCs
        bm //= 2
    return bm, bk, n_pad


def gat_forward(x, W, b, a, *, num_head, block_m=512, block_k=1024):
    """x: (N, D) f32; W: (D, D) torch-style (out, in); b: (D,); a: (H, 2*D)."""
    N, D = x.shape
    d_pad = _round_up(D, 128)                       # lane-dense feature dim
    bm, bk, n_pad = _pick_blocks(N, block_m, block_k)

    xf = x.astype(jnp.float32)
    Wf = W.astype(jnp.float32)
    bf = b.astype(jnp.float32)
    af = a.astype(jnp.float32)

    a1 = af[:, :D].T                                # (D, H)
    a2 = af[:, D:].T                                # (D, H)
    # Fold the Linear layer:  a_h . (W x + b) = (W^T a_h) . x + a_h . b
    a1_eff = Wf.T @ a1                              # (D, H)
    a2_eff = Wf.T @ a2                              # (D, H)
    c1 = (bf @ a1).reshape(1, num_head)             # (1, H) f32
    c2 = (bf @ a2).reshape(1, num_head)             # (1, H) f32

    # bf16 x stream (used for both the row and the re-read column streams).
    x_p = jnp.zeros((n_pad, d_pad), jnp.bfloat16).at[:N, :D].set(
        xf.astype(jnp.bfloat16))
    a1_p = jnp.zeros((d_pad, num_head), jnp.bfloat16).at[:D, :].set(
        a1_eff.astype(jnp.bfloat16))
    a2_p = jnp.zeros((d_pad, num_head), jnp.bfloat16).at[:D, :].set(
        a2_eff.astype(jnp.bfloat16))

    grid = (n_pad // bm, n_pad // bk)

    # bf16 exp only where the EUP is bf16-capable (v6e / v7x); f32 otherwise.
    kind = jax.devices()[0].device_kind.lower()
    bf16_exp = not any(v in kind for v in ("v2", "v3", "v4", "v5"))

    kernel = functools.partial(gat_flash_kernel, num_head=num_head,
                               n_valid=N, block_k=bk, bf16_exp=bf16_exp)

    cost = pl.CostEstimate(
        flops=int(2 * num_head * n_pad * n_pad * d_pad              # p @ x
                  + 2 * num_head * (grid[0] + 1) * n_pad * d_pad    # logit matmuls
                  + 8 * num_head * n_pad * n_pad),                  # softmax elementwise
        transcendentals=int(num_head * n_pad * n_pad),
        bytes_accessed=int((grid[0] + 1) * n_pad * d_pad * 2        # bf16 x streams
                           + n_pad * d_pad * 4))                    # f32 output

    out = pl.pallas_call(
        kernel,
        out_shape=jax.ShapeDtypeStruct((n_pad, d_pad), jnp.float32),
        grid_spec=pltpu.PrefetchScalarGridSpec(
            num_scalar_prefetch=0,
            grid=grid,
            in_specs=[
                pl.BlockSpec((bm, d_pad), lambda i, j: (i, 0)),        # x rows ("queries")
                pl.BlockSpec((bk, d_pad), lambda i, j: (j, 0)),        # x cols ("keys"/values)
                pl.BlockSpec((d_pad, num_head), lambda i, j: (0, 0)),  # a1_eff
                pl.BlockSpec((d_pad, num_head), lambda i, j: (0, 0)),  # a2_eff
                pl.BlockSpec((1, num_head), lambda i, j: (0, 0)),      # c1
                pl.BlockSpec((1, num_head), lambda i, j: (0, 0)),      # c2
            ],
            out_specs=pl.BlockSpec((bm, d_pad), lambda i, j: (i, 0)),
            scratch_shapes=[
                pltpu.VMEM((num_head, bm, 1), jnp.float32),            # row-side logits
                pltpu.VMEM((num_head, bm, 1), jnp.float32),            # running max
                pltpu.VMEM((num_head, bm, 1), jnp.float32),            # running denom
                pltpu.VMEM((num_head, bm, d_pad), jnp.float32),        # output accumulator
                pltpu.VMEM((num_head * bm, bk), jnp.bfloat16),         # fused-matmul staging
            ]),
        compiler_params=pltpu.CompilerParams(
            dimension_semantics=("parallel", "arbitrary"),
            vmem_limit_bytes=32 * 1024 * 1024),
        cost_estimate=cost,
    )(x_p, x_p, a1_p, a2_p, c1, c2)

    return out[:N, :D]


def gat_ref(x, W, b, a, *, num_head):
    """Pure-JAX reference mirroring the PyTorch module."""
    N, D = x.shape
    xt = x @ W.T + b
    att_sum = jnp.zeros((N, N), jnp.float32)
    for h in range(num_head):
        a1 = a[h, :D]
        a2 = a[h, D:]
        e = (xt @ a1)[None, :] + (xt @ a2)[:, None]   # E[i,j]=a1.xt[j]+a2.xt[i]
        e = jnp.where(e >= 0, e, 0.01 * e)
        e = e - jnp.max(e, axis=1, keepdims=True)
        p = jnp.exp(e)
        att_sum = att_sum + p / jnp.sum(p, axis=1, keepdims=True)
    return (att_sum / num_head) @ x


def _check(out, ref, name):
    max_err = float(jnp.max(jnp.abs(out - ref)))
    # bf16 x stream + bf16 logit matmuls + bf16 exp (v6e/v7x) + approx
    # reciprocal => relaxed tolerance (accumulators are kept in f32).
    assert jnp.allclose(out, ref, atol=5e-2, rtol=5e-2), \
        f"{name}: mismatch vs reference (max abs err {max_err})"


if __name__ == "__main__":
    key = jax.random.PRNGKey(0)
    k_x, k_w, k_b, k_a = jax.random.split(key, 4)

    # Case 1: small, N not a multiple of any block size, D < 128 (padding +
    # column masking in a single-block grid). H=2 exercises the head loop.
    N, D, H = 50, 64, 2
    x = jax.random.normal(k_x, (N, D), jnp.float32)
    W = jax.random.normal(k_w, (D, D), jnp.float32) * (1.0 / jnp.sqrt(D))
    b = jax.random.normal(k_b, (D,), jnp.float32) * 0.1
    a = jax.random.normal(k_a, (H, 2 * D), jnp.float32)

    out = jax.block_until_ready(gat_forward(x, W, b, a, num_head=H))
    assert out.shape == (N, D)
    _check(out, gat_ref(x, W, b, a, num_head=H), "small")

    # Case 2: multi-block grid (3x3) to exercise the online-softmax rescale
    # across column blocks and the row-parallel axis.
    N2 = 300
    k_x2, _ = jax.random.split(k_x)
    x2 = jax.random.normal(k_x2, (N2, D), jnp.float32)
    out2 = jax.block_until_ready(
        gat_forward(x2, W, b, a, num_head=H, block_m=128, block_k=128))
    assert out2.shape == (N2, D)
    _check(out2, gat_ref(x2, W, b, a, num_head=H), "multiblock")

    print("KERNEL_OK")
</pallas_src>

<mosaic_0001>
module attributes {stable_mosaic.version = 11 : i64} {
  func.func @gat_flash_kernel(%arg0: i32, %arg1: i32, %arg2: memref<128x128xbf16, #tpu.memory_space<vmem>>, %arg3: memref<128x128xbf16, #tpu.memory_space<vmem>>, %arg4: memref<128x2xbf16, #tpu.memory_space<vmem>>, %arg5: memref<128x2xbf16, #tpu.memory_space<vmem>>, %arg6: memref<1x2xf32, #tpu.memory_space<vmem>>, %arg7: memref<1x2xf32, #tpu.memory_space<vmem>>, %arg8: memref<128x128xf32, #tpu.memory_space<vmem>>, %arg9: memref<2x128x1xf32, #tpu.memory_space<vmem>>, %arg10: memref<2x128x1xf32, #tpu.memory_space<vmem>>, %arg11: memref<2x128x1xf32, #tpu.memory_space<vmem>>, %arg12: memref<2x128x128xf32, #tpu.memory_space<vmem>>, %arg13: memref<256x128xbf16, #tpu.memory_space<vmem>>) attributes {dimension_semantics = [#tpu.dimension_semantics<parallel>, #tpu.dimension_semantics<arbitrary>], iteration_bounds = array<i64: 1, 1>, scalar_prefetch = 0 : i64, scratch_operands = 5 : i64, tpu.core_type = #tpu.core_type<tc>, window_params = [{transform_indices = @transform_0, window_bounds = array<i64: 128, 128>}, {transform_indices = @transform_1, window_bounds = array<i64: 128, 128>}, {pipeline_mode = #tpu.pipeline_mode<synchronous>, transform_indices = @transform_2, window_bounds = array<i64: 128, 2>}, {pipeline_mode = #tpu.pipeline_mode<synchronous>, transform_indices = @transform_3, window_bounds = array<i64: 128, 2>}, {pipeline_mode = #tpu.pipeline_mode<synchronous>, transform_indices = @transform_4, window_bounds = array<i64: 1, 2>}, {pipeline_mode = #tpu.pipeline_mode<synchronous>, transform_indices = @transform_5, window_bounds = array<i64: 1, 2>}, {transform_indices = @transform_6, window_bounds = array<i64: 128, 128>}]} {
    %c0_i32 = arith.constant 0 : i32
    %0 = arith.cmpi eq, %arg1, %c0_i32 : i32
    %1 = arith.extui %0 : i1 to i32
    %c0_i32_0 = arith.constant 0 : i32
    %2 = arith.cmpi ne, %1, %c0_i32_0 : i32
    scf.if %2 {
      %c0_62 = arith.constant 0 : index
      %c0_63 = arith.constant 0 : index
      %111 = vector.load %arg2[%c0_62, %c0_63] : memref<128x128xbf16, #tpu.memory_space<vmem>>, vector<128x128xbf16>
      %c0_64 = arith.constant 0 : index
      %c0_65 = arith.constant 0 : index
      %112 = vector.load %arg5[%c0_64, %c0_65] : memref<128x2xbf16, #tpu.memory_space<vmem>>, vector<128x2xbf16>
      %cst_66 = arith.constant dense<0.000000e+00> : vector<128x2xf32>
      %113 = tpu.matmul %111, %112, %cst_66 {dimension_numbers = #tpu.dot_dimension_numbers<[1], [0], [0], [1], [0, 0, 1, 1], [], []>} : vector<128x128xbf16>, vector<128x2xbf16>, vector<128x2xf32> -> vector<128x2xf32>
      %c0_67 = arith.constant 0 : index
      %c0_68 = arith.constant 0 : index
      %114 = vector.load %arg7[%c0_67, %c0_68] : memref<1x2xf32, #tpu.memory_space<vmem>>, vector<1x2xf32>
      %115 = vector.broadcast %114 : vector<1x2xf32> to vector<128x2xf32>
      %116 = arith.addf %113, %115 : vector<128x2xf32>
      %117 = vector.extract_strided_slice %116 {offsets = [0, 0], sizes = [128, 1], strides = [1, 1]} : vector<128x2xf32> to vector<128x1xf32>
      %c0_69 = arith.constant 0 : index
      %c0_70 = arith.constant 0 : index
      %c0_71 = arith.constant 0 : index
      %118 = vector.load %arg9[%c0_69, %c0_70, %c0_71] : memref<2x128x1xf32, #tpu.memory_space<vmem>>, vector<1x128x1xf32>
      %119 = vector.shape_cast %118 : vector<1x128x1xf32> to vector<128x1xf32>
      %120 = vector.shape_cast %117 : vector<128x1xf32> to vector<1x128x1xf32>
      tpu.vector_store %arg9[%c0_69, %c0_70, %c0_71], %120 {strides = array<i32>} : memref<2x128x1xf32, #tpu.memory_space<vmem>>, vector<1x128x1xf32>,
      %121 = vector.extract_strided_slice %116 {offsets = [0, 1], sizes = [128, 1], strides = [1, 1]} : vector<128x2xf32> to vector<128x1xf32>
      %c1_72 = arith.constant 1 : index
      %c0_73 = arith.constant 0 : index
      %c0_74 = arith.constant 0 : index
      %122 = vector.load %arg9[%c1_72, %c0_73, %c0_74] : memref<2x128x1xf32, #tpu.memory_space<vmem>>, vector<1x128x1xf32>
      %123 = vector.shape_cast %122 : vector<1x128x1xf32> to vector<128x1xf32>
      %124 = vector.shape_cast %121 : vector<128x1xf32> to vector<1x128x1xf32>
      tpu.vector_store %arg9[%c1_72, %c0_73, %c0_74], %124 {strides = array<i32>} : memref<2x128x1xf32, #tpu.memory_space<vmem>>, vector<1x128x1xf32>,
      %cst_75 = arith.constant 0xFF800000 : f32
      %125 = vector.broadcast %cst_75 : f32 to vector<2x128x1xf32>
      %c0_76 = arith.constant 0 : index
      %c0_77 = arith.constant 0 : index
      %c0_78 = arith.constant 0 : index
      %126 = vector.load %arg10[%c0_76, %c0_77, %c0_78] : memref<2x128x1xf32, #tpu.memory_space<vmem>>, vector<2x128x1xf32>
      tpu.vector_store %arg10[%c0_76, %c0_77, %c0_78], %125 {strides = array<i32>} : memref<2x128x1xf32, #tpu.memory_space<vmem>>, vector<2x128x1xf32>,
      %cst_79 = arith.constant 0.000000e+00 : f32
      %127 = vector.broadcast %cst_79 : f32 to vector<2x128x1xf32>
      %c0_80 = arith.constant 0 : index
      %c0_81 = arith.constant 0 : index
      %c0_82 = arith.constant 0 : index
      %128 = vector.load %arg11[%c0_80, %c0_81, %c0_82] : memref<2x128x1xf32, #tpu.memory_space<vmem>>, vector<2x128x1xf32>
      tpu.vector_store %arg11[%c0_80, %c0_81, %c0_82], %127 {strides = array<i32>} : memref<2x128x1xf32, #tpu.memory_space<vmem>>, vector<2x128x1xf32>,
      %cst_83 = arith.constant 0.000000e+00 : f32
      %129 = vector.broadcast %cst_83 : f32 to vector<2x128x128xf32>
      %c0_84 = arith.constant 0 : index
      %c0_85 = arith.constant 0 : index
      %c0_86 = arith.constant 0 : index
      %130 = vector.load %arg12[%c0_84, %c0_85, %c0_86] : memref<2x128x128xf32, #tpu.memory_space<vmem>>, vector<2x128x128xf32>
      tpu.vector_store %arg12[%c0_84, %c0_85, %c0_86], %129 {strides = array<i32>} : memref<2x128x128xf32, #tpu.memory_space<vmem>>, vector<2x128x128xf32>,
    } else {
    }
    %c0 = arith.constant 0 : index
    %c0_1 = arith.constant 0 : index
    %3 = vector.load %arg3[%c0, %c0_1] : memref<128x128xbf16, #tpu.memory_space<vmem>>, vector<128x128xbf16>
    %c0_2 = arith.constant 0 : index
    %c0_3 = arith.constant 0 : index
    %4 = vector.load %arg4[%c0_2, %c0_3] : memref<128x2xbf16, #tpu.memory_space<vmem>>, vector<128x2xbf16>
    %cst = arith.constant dense<0.000000e+00> : vector<128x2xf32>
    %5 = tpu.matmul %3, %4, %cst {dimension_numbers = #tpu.dot_dimension_numbers<[1], [0], [0], [1], [0, 0, 1, 1], [], []>} : vector<128x128xbf16>, vector<128x2xbf16>, vector<128x2xf32> -> vector<128x2xf32>
    %c0_4 = arith.constant 0 : index
    %c0_5 = arith.constant 0 : index
    %6 = vector.load %arg6[%c0_4, %c0_5] : memref<1x2xf32, #tpu.memory_space<vmem>>, vector<1x2xf32>
    %7 = vector.broadcast %6 : vector<1x2xf32> to vector<128x2xf32>
    %8 = arith.addf %5, %7 : vector<128x2xf32>
    %c128_i32 = arith.constant 128 : i32
    %9 = arith.muli %arg1, %c128_i32 : i32
    %10 = tpu.iota {dimensions = array<i32: 0>} : vector<128x1xi32>
    %11 = vector.broadcast %9 : i32 to vector<128x1xi32>
    %12 = arith.addi %11, %10 : vector<128x1xi32>
    %c50_i32 = arith.constant 50 : i32
    %13 = vector.broadcast %c50_i32 : i32 to vector<128x1xi32>
    %14 = arith.cmpi slt, %12, %13 : vector<128x1xi32>
    %cst_6 = arith.constant -1.000000e+30 : f32
    %15 = vector.shape_cast %14 : vector<128x1xi1> to vector<128x1xi1>
    %16 = vector.broadcast %15 : vector<128x1xi1> to vector<128x2xi1>
    %17 = vector.broadcast %cst_6 : f32 to vector<128x2xf32>
    %18 = arith.select %16, %8, %17 : vector<128x2xi1>, vector<128x2xf32>
    %19 = tpu.transpose %18, [1, 0] : vector<128x2xf32> -> vector<2x128xf32>
    %20 = vector.extract_strided_slice %19 {offsets = [0, 0], sizes = [1, 128], strides = [1, 1]} : vector<2x128xf32> to vector<1x128xf32>
    %c0_7 = arith.constant 0 : index
    %c0_8 = arith.constant 0 : index
    %c0_9 = arith.constant 0 : index
    %21 = vector.load %arg9[%c0_7, %c0_8, %c0_9] : memref<2x128x1xf32, #tpu.memory_space<vmem>>, vector<1x128x1xf32>
    %22 = vector.shape_cast %21 : vector<1x128x1xf32> to vector<128x1xf32>
    %23 = vector.broadcast %20 : vector<1x128xf32> to vector<128x128xf32>
    %24 = vector.broadcast %22 : vector<128x1xf32> to vector<128x128xf32>
    %25 = arith.addf %23, %24 : vector<128x128xf32>
    %cst_10 = arith.constant 0.00999999977 : f32
    %26 = vector.broadcast %cst_10 : f32 to vector<128x128xf32>
    %27 = arith.mulf %26, %25 : vector<128x128xf32>
    %28 = arith.maximumf %25, %27 : vector<128x128xf32>
    %c0_11 = arith.constant 0 : index
    %c0_12 = arith.constant 0 : index
    %c0_13 = arith.constant 0 : index
    %29 = vector.load %arg10[%c0_11, %c0_12, %c0_13] : memref<2x128x1xf32, #tpu.memory_space<vmem>>, vector<1x128x1xf32>
    %30 = vector.shape_cast %29 : vector<1x128x1xf32> to vector<128x1xf32>
    %cst_14 = arith.constant dense<0xFF800000> : vector<128xf32>
    %31 = vector.multi_reduction <maximumf>, %28, %cst_14 [1] : vector<128x128xf32> to vector<128xf32>
    %32 = vector.shape_cast %31 : vector<128xf32> to vector<128x1xf32>
    %33 = arith.maximumf %30, %32 : vector<128x1xf32>
    %34 = arith.subf %30, %33 : vector<128x1xf32>
    %35 = math.exp %34 : vector<128x1xf32>
    %36 = vector.broadcast %33 : vector<128x1xf32> to vector<128x128xf32>
    %37 = arith.subf %28, %36 : vector<128x128xf32>
    %38 = arith.truncf %37 : vector<128x128xf32> to vector<128x128xbf16>
    %39 = math.exp %38 : vector<128x128xbf16>
    %c0_15 = arith.constant 0 : index
    %c0_16 = arith.constant 0 : index
    %c0_17 = arith.constant 0 : index
    %40 = vector.load %arg11[%c0_15, %c0_16, %c0_17] : memref<2x128x1xf32, #tpu.memory_space<vmem>>, vector<1x128x1xf32>
    %41 = vector.shape_cast %40 : vector<1x128x1xf32> to vector<128x1xf32>
    %42 = arith.mulf %35, %41 : vector<128x1xf32>
    %43 = arith.extf %39 : vector<128x128xbf16> to vector<128x128xf32>
    %cst_18 = arith.constant dense<0.000000e+00> : vector<128xf32>
    %44 = vector.multi_reduction <add>, %43, %cst_18 [1] : vector<128x128xf32> to vector<128xf32>
    %45 = vector.shape_cast %44 : vector<128xf32> to vector<128x1xf32>
    %46 = arith.addf %42, %45 : vector<128x1xf32>
    %c0_19 = arith.constant 0 : index
    %c0_20 = arith.constant 0 : index
    %c0_21 = arith.constant 0 : index
    %47 = vector.load %arg11[%c0_19, %c0_20, %c0_21] : memref<2x128x1xf32, #tpu.memory_space<vmem>>, vector<1x128x1xf32>
    %48 = vector.shape_cast %47 : vector<1x128x1xf32> to vector<128x1xf32>
    %49 = vector.shape_cast %46 : vector<128x1xf32> to vector<1x128x1xf32>
    tpu.vector_store %arg11[%c0_19, %c0_20, %c0_21], %49 {strides = array<i32>} : memref<2x128x1xf32, #tpu.memory_space<vmem>>, vector<1x128x1xf32>,
    %c0_22 = arith.constant 0 : index
    %c0_23 = arith.constant 0 : index
    %c0_24 = arith.constant 0 : index
    %50 = vector.load %arg10[%c0_22, %c0_23, %c0_24] : memref<2x128x1xf32, #tpu.memory_space<vmem>>, vector<1x128x1xf32>
    %51 = vector.shape_cast %50 : vector<1x128x1xf32> to vector<128x1xf32>
    %52 = vector.shape_cast %33 : vector<128x1xf32> to vector<1x128x1xf32>
    tpu.vector_store %arg10[%c0_22, %c0_23, %c0_24], %52 {strides = array<i32>} : memref<2x128x1xf32, #tpu.memory_space<vmem>>, vector<1x128x1xf32>,
    %c0_25 = arith.constant 0 : index
    %c0_26 = arith.constant 0 : index
    %53 = vector.load %arg13[%c0_25, %c0_26] : memref<256x128xbf16, #tpu.memory_space<vmem>>, vector<128x128xbf16>
    tpu.vector_store %arg13[%c0_25, %c0_26], %39 {strides = array<i32>} : memref<256x128xbf16, #tpu.memory_space<vmem>>, vector<128x128xbf16>,
    %54 = vector.extract_strided_slice %19 {offsets = [1, 0], sizes = [1, 128], strides = [1, 1]} : vector<2x128xf32> to vector<1x128xf32>
    %c1 = arith.constant 1 : index
    %c0_27 = arith.constant 0 : index
    %c0_28 = arith.constant 0 : index
    %55 = vector.load %arg9[%c1, %c0_27, %c0_28] : memref<2x128x1xf32, #tpu.memory_space<vmem>>, vector<1x128x1xf32>
    %56 = vector.shape_cast %55 : vector<1x128x1xf32> to vector<128x1xf32>
    %57 = vector.broadcast %54 : vector<1x128xf32> to vector<128x128xf32>
    %58 = vector.broadcast %56 : vector<128x1xf32> to vector<128x128xf32>
    %59 = arith.addf %57, %58 : vector<128x128xf32>
    %cst_29 = arith.constant 0.00999999977 : f32
    %60 = vector.broadcast %cst_29 : f32 to vector<128x128xf32>
    %61 = arith.mulf %60, %59 : vector<128x128xf32>
    %62 = arith.maximumf %59, %61 : vector<128x128xf32>
    %c1_30 = arith.constant 1 : index
    %c0_31 = arith.constant 0 : index
    %c0_32 = arith.constant 0 : index
    %63 = vector.load %arg10[%c1_30, %c0_31, %c0_32] : memref<2x128x1xf32, #tpu.memory_space<vmem>>, vector<1x128x1xf32>
    %64 = vector.shape_cast %63 : vector<1x128x1xf32> to vector<128x1xf32>
    %cst_33 = arith.constant dense<0xFF800000> : vector<128xf32>
    %65 = vector.multi_reduction <maximumf>, %62, %cst_33 [1] : vector<128x128xf32> to vector<128xf32>
    %66 = vector.shape_cast %65 : vector<128xf32> to vector<128x1xf32>
    %67 = arith.maximumf %64, %66 : vector<128x1xf32>
    %68 = arith.subf %64, %67 : vector<128x1xf32>
    %69 = math.exp %68 : vector<128x1xf32>
    %70 = vector.broadcast %67 : vector<128x1xf32> to vector<128x128xf32>
    %71 = arith.subf %62, %70 : vector<128x128xf32>
    %72 = arith.truncf %71 : vector<128x128xf32> to vector<128x128xbf16>
    %73 = math.exp %72 : vector<128x128xbf16>
    %c1_34 = arith.constant 1 : index
    %c0_35 = arith.constant 0 : index
    %c0_36 = arith.constant 0 : index
    %74 = vector.load %arg11[%c1_34, %c0_35, %c0_36] : memref<2x128x1xf32, #tpu.memory_space<vmem>>, vector<1x128x1xf32>
    %75 = vector.shape_cast %74 : vector<1x128x1xf32> to vector<128x1xf32>
    %76 = arith.mulf %69, %75 : vector<128x1xf32>
    %77 = arith.extf %73 : vector<128x128xbf16> to vector<128x128xf32>
    %cst_37 = arith.constant dense<0.000000e+00> : vector<128xf32>
    %78 = vector.multi_reduction <add>, %77, %cst_37 [1] : vector<128x128xf32> to vector<128xf32>
    %79 = vector.shape_cast %78 : vector<128xf32> to vector<128x1xf32>
    %80 = arith.addf %76, %79 : vector<128x1xf32>
    %c1_38 = arith.constant 1 : index
    %c0_39 = arith.constant 0 : index
    %c0_40 = arith.constant 0 : index
    %81 = vector.load %arg11[%c1_38, %c0_39, %c0_40] : memref<2x128x1xf32, #tpu.memory_space<vmem>>, vector<1x128x1xf32>
    %82 = vector.shape_cast %81 : vector<1x128x1xf32> to vector<128x1xf32>
    %83 = vector.shape_cast %80 : vector<128x1xf32> to vector<1x128x1xf32>
    tpu.vector_store %arg11[%c1_38, %c0_39, %c0_40], %83 {strides = array<i32>} : memref<2x128x1xf32, #tpu.memory_space<vmem>>, vector<1x128x1xf32>,
    %c1_41 = arith.constant 1 : index
    %c0_42 = arith.constant 0 : index
    %c0_43 = arith.constant 0 : index
    %84 = vector.load %arg10[%c1_41, %c0_42, %c0_43] : memref<2x128x1xf32, #tpu.memory_space<vmem>>, vector<1x128x1xf32>
    %85 = vector.shape_cast %84 : vector<1x128x1xf32> to vector<128x1xf32>
    %86 = vector.shape_cast %67 : vector<128x1xf32> to vector<1x128x1xf32>
    tpu.vector_store %arg10[%c1_41, %c0_42, %c0_43], %86 {strides = array<i32>} : memref<2x128x1xf32, #tpu.memory_space<vmem>>, vector<1x128x1xf32>,
    %c128 = arith.constant 128 : index
    %c0_44 = arith.constant 0 : index
    %87 = vector.load %arg13[%c128, %c0_44] : memref<256x128xbf16, #tpu.memory_space<vmem>>, vector<128x128xbf16>
    tpu.vector_store %arg13[%c128, %c0_44], %73 {strides = array<i32>} : memref<256x128xbf16, #tpu.memory_space<vmem>>, vector<128x128xbf16>,
    %c0_45 = arith.constant 0 : index
    %c0_46 = arith.constant 0 : index
    %88 = vector.load %arg13[%c0_45, %c0_46] : memref<256x128xbf16, #tpu.memory_space<vmem>>, vector<256x128xbf16>
    %cst_47 = arith.constant dense<0.000000e+00> : vector<256x128xf32>
    %89 = tpu.matmul %88, %3, %cst_47 {dimension_numbers = #tpu.dot_dimension_numbers<[1], [0], [0], [1], [0, 0, 1, 1], [], []>} : vector<256x128xbf16>, vector<128x128xbf16>, vector<256x128xf32> -> vector<256x128xf32>
    %c0_48 = arith.constant 0 : index
    %c0_49 = arith.constant 0 : index
    %c0_50 = arith.constant 0 : index
    %90 = vector.load %arg12[%c0_48, %c0_49, %c0_50] : memref<2x128x128xf32, #tpu.memory_space<vmem>>, vector<1x128x128xf32>
    %91 = vector.shape_cast %90 : vector<1x128x128xf32> to vector<128x128xf32>
    %92 = vector.broadcast %35 : vector<128x1xf32> to vector<128x128xf32>
    %93 = arith.mulf %92, %91 : vector<128x128xf32>
    %94 = vector.extract_strided_slice %89 {offsets = [0, 0], sizes = [128, 128], strides = [1, 1]} : vector<256x128xf32> to vector<128x128xf32>
    %95 = arith.addf %93, %94 : vector<128x128xf32>
    %c0_51 = arith.constant 0 : index
    %c0_52 = arith.constant 0 : index
    %c0_53 = arith.constant 0 : index
    %96 = vector.load %arg12[%c0_51, %c0_52, %c0_53] : memref<2x128x128xf32, #tpu.memory_space<vmem>>, vector<1x128x128xf32>
    %97 = vector.shape_cast %96 : vector<1x128x128xf32> to vector<128x128xf32>
    %98 = vector.shape_cast %95 : vector<128x128xf32> to vector<1x128x128xf32>
    tpu.vector_store %arg12[%c0_51, %c0_52, %c0_53], %98 {strides = array<i32>} : memref<2x128x128xf32, #tpu.memory_space<vmem>>, vector<1x128x128xf32>,
    %c1_54 = arith.constant 1 : index
    %c0_55 = arith.constant 0 : index
    %c0_56 = arith.constant 0 : index
    %99 = vector.load %arg12[%c1_54, %c0_55, %c0_56] : memref<2x128x128xf32, #tpu.memory_space<vmem>>, vector<1x128x128xf32>
    %100 = vector.shape_cast %99 : vector<1x128x128xf32> to vector<128x128xf32>
    %101 = vector.broadcast %69 : vector<128x1xf32> to vector<128x128xf32>
    %102 = arith.mulf %101, %100 : vector<128x128xf32>
    %103 = vector.extract_strided_slice %89 {offsets = [128, 0], sizes = [128, 128], strides = [1, 1]} : vector<256x128xf32> to vector<128x128xf32>
    %104 = arith.addf %102, %103 : vector<128x128xf32>
    %c1_57 = arith.constant 1 : index
    %c0_58 = arith.constant 0 : index
    %c0_59 = arith.constant 0 : index
    %105 = vector.load %arg12[%c1_57, %c0_58, %c0_59] : memref<2x128x128xf32, #tpu.memory_space<vmem>>, vector<1x128x128xf32>
    %106 = vector.shape_cast %105 : vector<1x128x128xf32> to vector<128x128xf32>
    %107 = vector.shape_cast %104 : vector<128x128xf32> to vector<1x128x128xf32>
    tpu.vector_store %arg12[%c1_57, %c0_58, %c0_59], %107 {strides = array<i32>} : memref<2x128x128xf32, #tpu.memory_space<vmem>>, vector<1x128x128xf32>,
    %c0_i32_60 = arith.constant 0 : i32
    %108 = arith.cmpi eq, %arg1, %c0_i32_60 : i32
    %109 = arith.extui %108 : i1 to i32
    %c0_i32_61 = arith.constant 0 : i32
    %110 = arith.cmpi ne, %109, %c0_i32_61 : i32
    scf.if %110 {
      %cst_62 = arith.constant 0.000000e+00 : f32
      %111 = vector.broadcast %cst_62 : f32 to vector<128x128xf32>
      %c0_63 = arith.constant 0 : index
      %c0_64 = arith.constant 0 : index
      %c0_65 = arith.constant 0 : index
      %112 = vector.load %arg12[%c0_63, %c0_64, %c0_65] : memref<2x128x128xf32, #tpu.memory_space<vmem>>, vector<1x128x128xf32>
      %113 = vector.shape_cast %112 : vector<1x128x128xf32> to vector<128x128xf32>
      %c0_66 = arith.constant 0 : index
      %c0_67 = arith.constant 0 : index
      %c0_68 = arith.constant 0 : index
      %114 = vector.load %arg11[%c0_66, %c0_67, %c0_68] : memref<2x128x1xf32, #tpu.memory_space<vmem>>, vector<1x128x1xf32>
      %115 = vector.shape_cast %114 : vector<1x128x1xf32> to vector<128x1xf32>
      %116 = tpu.reciprocal %115 {approx = true} : vector<128x1xf32> -> vector<128x1xf32>
      %117 = vector.broadcast %116 : vector<128x1xf32> to vector<128x128xf32>
      %118 = arith.mulf %113, %117 : vector<128x128xf32>
      %119 = arith.addf %111, %118 : vector<128x128xf32>
      %c1_69 = arith.constant 1 : index
      %c0_70 = arith.constant 0 : index
      %c0_71 = arith.constant 0 : index
      %120 = vector.load %arg12[%c1_69, %c0_70, %c0_71] : memref<2x128x128xf32, #tpu.memory_space<vmem>>, vector<1x128x128xf32>
      %121 = vector.shape_cast %120 : vector<1x128x128xf32> to vector<128x128xf32>
      %c1_72 = arith.constant 1 : index
      %c0_73 = arith.constant 0 : index
      %c0_74 = arith.constant 0 : index
      %122 = vector.load %arg11[%c1_72, %c0_73, %c0_74] : memref<2x128x1xf32, #tpu.memory_space<vmem>>, vector<1x128x1xf32>
      %123 = vector.shape_cast %122 : vector<1x128x1xf32> to vector<128x1xf32>
      %124 = tpu.reciprocal %123 {approx = true} : vector<128x1xf32> -> vector<128x1xf32>
      %125 = vector.broadcast %124 : vector<128x1xf32> to vector<128x128xf32>
      %126 = arith.mulf %121, %125 : vector<128x128xf32>
      %127 = arith.addf %119, %126 : vector<128x128xf32>
      %cst_75 = arith.constant 5.000000e-01 : f32
      %128 = vector.broadcast %cst_75 : f32 to vector<128x128xf32>
      %129 = arith.mulf %127, %128 : vector<128x128xf32>
      %c0_76 = arith.constant 0 : index
      %c0_77 = arith.constant 0 : index
      %130 = vector.load %arg8[%c0_76, %c0_77] : memref<128x128xf32, #tpu.memory_space<vmem>>, vector<128x128xf32>
      tpu.vector_store %arg8[%c0_76, %c0_77], %129 {strides = array<i32>} : memref<128x128xf32, #tpu.memory_space<vmem>>, vector<128x128xf32>,
    } else {
    }
    return
  }
  func.func @transform_0(%arg0: i32, %arg1: i32) -> (i32, i32) {
    %c0_i32 = arith.constant 0 : i32
    %c0_i32_0 = arith.constant 0 : i32
    return %arg0, %c0_i32 : i32, i32
  }
  func.func @transform_1(%arg0: i32, %arg1: i32) -> (i32, i32) {
    %c0_i32 = arith.constant 0 : i32
    %c0_i32_0 = arith.constant 0 : i32
    return %arg1, %c0_i32 : i32, i32
  }
  func.func @transform_2(%arg0: i32, %arg1: i32) -> (i32, i32) {
    %c0_i32 = arith.constant 0 : i32
    %c0_i32_0 = arith.constant 0 : i32
    %c0_i32_1 = arith.constant 0 : i32
    return %c0_i32, %c0_i32_0 : i32, i32
  }
  func.func @transform_3(%arg0: i32, %arg1: i32) -> (i32, i32) {
    %c0_i32 = arith.constant 0 : i32
    %c0_i32_0 = arith.constant 0 : i32
    %c0_i32_1 = arith.constant 0 : i32
    return %c0_i32, %c0_i32_0 : i32, i32
  }
  func.func @transform_4(%arg0: i32, %arg1: i32) -> (i32, i32) {
    %c0_i32 = arith.constant 0 : i32
    %c0_i32_0 = arith.constant 0 : i32
    %c0_i32_1 = arith.constant 0 : i32
    return %c0_i32, %c0_i32_0 : i32, i32
  }
  func.func @transform_5(%arg0: i32, %arg1: i32) -> (i32, i32) {
    %c0_i32 = arith.constant 0 : i32
    %c0_i32_0 = arith.constant 0 : i32
    %c0_i32_1 = arith.constant 0 : i32
    return %c0_i32, %c0_i32_0 : i32, i32
  }
  func.func @transform_6(%arg0: i32, %arg1: i32) -> (i32, i32) {
    %c0_i32 = arith.constant 0 : i32
    %c0_i32_0 = arith.constant 0 : i32
    return %arg0, %c0_i32 : i32, i32
  }
}

</mosaic_0001>

<llo_original>
// kernel: tpu_custom_call.1
$region0: #{tpu_custom_call.1}
  #allocation0 [shape = 'u32[]', space=smem, size = 0x4, offset = 0x4, fixed_abs, tag = 'smem constant byte address 0x4 - core index']
  #allocation1 [shape = 'u32[144,128]{1,0:T(1,128)}', space=vmem, size = 0x12000, scoped, tag = 'internal scratch']
  #allocation2 [shape = 'f32[2,128,1]{2,1,0:T(8,128)}', space=vmem, size = 0x20000, scoped, tag = 'scratch operand']
  #allocation3 [shape = 'f32[2,128,1]{2,1,0:T(8,128)}', space=vmem, size = 0x20000, scoped, tag = 'scratch operand']
  #allocation4 [shape = 'f32[2,128,1]{2,1,0:T(8,128)}', space=vmem, size = 0x20000, scoped, tag = 'scratch operand']
  #allocation5 [shape = 'f32[2,128,128]{2,1,0:T(8,128)}', space=vmem, size = 0x20000, scoped, tag = 'scratch operand']
  #allocation6 [shape = 'bf16[256,128]{1,0:T(16,128)(2,1)}', space=vmem, size = 0x10000, scoped, tag = 'scratch operand']
  %s0 = inlined_call_operand.vmem [shape: bf16[128,128], index: 0, kind: input, shape index: {}]
  %s1 = inlined_call_operand.vmem [shape: bf16[128,128], index: 1, kind: input, shape index: {}]
  %s2 = inlined_call_operand.vmem [shape: bf16[128,2], index: 2, kind: input, shape index: {}]
  %s3 = inlined_call_operand.vmem [shape: bf16[128,2], index: 3, kind: input, shape index: {}]
  %s4 = inlined_call_operand.vmem [shape: f32[1,2], index: 4, kind: input, shape index: {}]
  %s5 = inlined_call_operand.vmem [shape: f32[1,2], index: 5, kind: input, shape index: {}]
  %s6 = inlined_call_operand.hbm [shape: f32[128,128], index: 6, kind: output, shape index: {}]
  %s7 = sld [smem:[#allocation0]]
  $region42: #{tpu_custom_call.1} parent=0
    _
  %s9 = ssub.s32 1, %s7
  %s10 = scalar_select 0, %s9, %s7
  $region1: #{tpu_custom_call.1} parent=0
    #allocation7 [shape = 'u8[65536]{0}', space=vmem, size = 0x10000, scoped, tag = 'output window, operand 0, single buffered']
    #allocation8 [shape = 's32[1]{0}', space=sflag, size = 0x4, scoped, tag = 'scoped memory for tpu_custom_call.1']
    %11 = vsyncpa [#allocation8], 0
    // Predicated region
    $region2: #{tpu_custom_call.1} parent=1 // pred_check
      _
    $region3: #{tpu_custom_call.1} parent=1 // pred_check_branch
      %13 = sbr.rel (0) target = $region5
    $region4: #{tpu_custom_call.1} parent=1 // pred_region
      _
    $region5: #{tpu_custom_call.1} parent=1 // pred_fallthru
      _
    // Predicated region
    $region6: #{tpu_custom_call.1} parent=1 // pred_check
      _
    $region7: #{tpu_custom_call.1} parent=1 // pred_check_branch
      %15 = sbr.rel (0) target = $region9
    $region8: #{tpu_custom_call.1} parent=1 // pred_region
      _
    $region9: #{tpu_custom_call.1} parent=1 // pred_fallthru
      _
    // Predicated region
    $region10: #{tpu_custom_call.1} parent=1 // pred_check
      _
    $region11: #{tpu_custom_call.1} parent=1 // pred_check_branch
      %17 = sbr.rel (0) target = $region13
    $region12: #{tpu_custom_call.1} parent=1 // pred_region
      _
    $region13: #{tpu_custom_call.1} parent=1 // pred_fallthru
      _
    // Predicated region
    $region14: #{tpu_custom_call.1} parent=1 // pred_check
      _
    $region15: #{tpu_custom_call.1} parent=1 // pred_check_branch
      %19 = sbr.rel (0) target = $region17
    $region16: #{tpu_custom_call.1} parent=1 // pred_region
      _
    $region17: #{tpu_custom_call.1} parent=1 // pred_fallthru
      _
    // Predicated region
    $region18: #{tpu_custom_call.1} parent=1 // pred_check
      _
    $region19: #{tpu_custom_call.1} parent=1 // pred_check_branch
      %21 = sbr.rel (0) target = $region21
    $region20: #{tpu_custom_call.1} parent=1 // pred_region
      _
    $region21: #{tpu_custom_call.1} parent=1 // pred_fallthru
      _
    // Predicated region
    $region22: #{tpu_custom_call.1} parent=1 // pred_check
      _
    $region23: #{tpu_custom_call.1} parent=1 // pred_check_branch
      %23 = sbr.rel (0) target = $region25
    $region24: #{tpu_custom_call.1} parent=1 // pred_region
      _
    $region25: #{tpu_custom_call.1} parent=1 // pred_fallthru
      _
    %p25 = scmp.eq.s32.totalorder 0, 0
    // Predicated region
    $region26: #{tpu_custom_call.1} parent=1 // pred_check
      %p26 = pneg %p25
    $region27: #{tpu_custom_call.1} parent=1 // pred_check_branch
      %28 = sbr.rel (%p26) target = $region29
    $region28: #{tpu_custom_call.1} parent=1 // pred_region
      %v29 = vld [vmem:[%s0] sm:$0xf]
      %v30 = vld [vmem:[%s0 + $0x4] sm:$0xf]
      %v31 = vld [vmem:[%s0 + $0x8] sm:$0xf]
      %v32 = vld [vmem:[%s0 + $0xc] sm:$0xf]
      %v33 = vld [vmem:[%s0 + $0x10] sm:$0xf]
      %v34 = vld [vmem:[%s0 + $0x14] sm:$0xf]
      %v35 = vld [vmem:[%s0 + $0x18] sm:$0xf]
      %v36 = vld [vmem:[%s0 + $0x1c] sm:$0xf]
      %v37 = vld [vmem:[%s0 + $0x20] sm:$0xf]
      %v38 = vld [vmem:[%s0 + $0x24] sm:$0xf]
      %v39 = vld [vmem:[%s0 + $0x28] sm:$0xf]
      %v40 = vld [vmem:[%s0 + $0x2c] sm:$0xf]
      %v41 = vld [vmem:[%s0 + $0x30] sm:$0xf]
      %v42 = vld [vmem:[%s0 + $0x34] sm:$0xf]
      %v43 = vld [vmem:[%s0 + $0x38] sm:$0xf]
      %v44 = vld [vmem:[%s0 + $0x3c] sm:$0xf]
      %v45 = vld [vmem:[%s3] sm:$0xf]
      %v46 = vld [vmem:[%s3 + $0x4] sm:$0xf]
      %v47 = vld [vmem:[%s3 + $0x8] sm:$0xf]
      %v48 = vld [vmem:[%s3 + $0xc] sm:$0xf]
      %v49 = vld [vmem:[%s3 + $0x10] sm:$0xf]
      %v50 = vld [vmem:[%s3 + $0x14] sm:$0xf]
      %v51 = vld [vmem:[%s3 + $0x18] sm:$0xf]
      %v52 = vld [vmem:[%s3 + $0x1c] sm:$0xf]
      %v53 = vld [vmem:[%s3 + $0x20] sm:$0xf]
      %v54 = vld [vmem:[%s3 + $0x24] sm:$0xf]
      %v55 = vld [vmem:[%s3 + $0x28] sm:$0xf]
      %v56 = vld [vmem:[%s3 + $0x2c] sm:$0xf]
      %v57 = vld [vmem:[%s3 + $0x30] sm:$0xf]
      %v58 = vld [vmem:[%s3 + $0x34] sm:$0xf]
      %v59 = vld [vmem:[%s3 + $0x38] sm:$0xf]
      %v60 = vld [vmem:[%s3 + $0x3c] sm:$0xf]
      %v61 = vld [vmem:[%s5] sm:$0x1]
      %v63 = vlaneseq
      %v64 = vshrl.u32 %v63, 7
      %v65 = vsub.s32 0, %v64
      %v66 = vrot.slane %v61, %v65
      %v84 = vunpack.c.l.b16 %v29
      %v85 = vunpack.c.l.b16 %v30
      %v86 = vunpack.c.l.b16 %v31
      %v87 = vunpack.c.l.b16 %v32
      %v88 = vunpack.c.l.b16 %v33
      %v89 = vunpack.c.l.b16 %v34
      %v90 = vunpack.c.l.b16 %v35
      %v91 = vunpack.c.l.b16 %v36
      %v92 = vunpack.c.l.b16 %v37
      %v93 = vunpack.c.l.b16 %v38
      %v94 = vunpack.c.l.b16 %v39
      %v95 = vunpack.c.l.b16 %v40
      %v96 = vunpack.c.l.b16 %v41
      %v97 = vunpack.c.l.b16 %v42
      %v98 = vunpack.c.l.b16 %v43
      %v99 = vunpack.c.l.b16 %v44
      %v100 = vpack.c.b16 %v85, %v84
      %v101 = vpack.c.b16 %v87, %v86
      %v102 = vpack.c.b16 %v89, %v88
      %v103 = vpack.c.b16 %v91, %v90
      %v104 = vpack.c.b16 %v93, %v92
      %v105 = vpack.c.b16 %v95, %v94
      %v106 = vpack.c.b16 %v97, %v96
      %v107 = vpack.c.b16 %v99, %v98
      %v132 = vunpack.c.l.b16 %v45
      %v133 = vunpack.c.l.b16 %v46
      %v134 = vunpack.c.l.b16 %v47
      %v135 = vunpack.c.l.b16 %v48
      %v136 = vunpack.c.l.b16 %v49
      %v137 = vunpack.c.l.b16 %v50
      %v138 = vunpack.c.l.b16 %v51
      %v139 = vunpack.c.l.b16 %v52
      %v140 = vunpack.c.l.b16 %v53
      %v141 = vunpack.c.l.b16 %v54
      %v142 = vunpack.c.l.b16 %v55
      %v143 = vunpack.c.l.b16 %v56
      %v144 = vunpack.c.l.b16 %v57
      %v145 = vunpack.c.l.b16 %v58
      %v146 = vunpack.c.l.b16 %v59
      %v147 = vunpack.c.l.b16 %v60
      %v148 = vpack.c.b16 %v133, %v132
      %v149 = vpack.c.b16 %v135, %v134
      %v150 = vpack.c.b16 %v137, %v136
      %v151 = vpack.c.b16 %v139, %v138
      %v152 = vpack.c.b16 %v141, %v140
      %v153 = vpack.c.b16 %v143, %v142
      %v154 = vpack.c.b16 %v145, %v144
      %v155 = vpack.c.b16 %v147, %v146
      %164 = vmatprep.subr.bf16.mxu0 0
      %165 = vmatpush1.bf16.msra.mxu0 %v148
      %166 = vmatprep.subr.bf16.mxu0 0
      %167 = vmatpush1.bf16.msra.mxu0 %v149
      %168 = vmatprep.subr.bf16.mxu0 0
      %169 = vmatpush1.bf16.msra.mxu0 %v150
      %170 = vmatprep.subr.bf16.mxu0 0
      %171 = vmatpush1.bf16.msra.mxu0 %v151
      %172 = vmatprep.subr.bf16.mxu0 0
      %173 = vmatpush1.bf16.msra.mxu0 %v152
      %174 = vmatprep.subr.bf16.mxu0 0
      %175 = vmatpush1.bf16.msra.mxu0 %v153
      %176 = vmatprep.subr.bf16.mxu0 0
      %177 = vmatpush1.bf16.msra.mxu0 %v154
      %178 = vmatprep.subr.bf16.mxu0 0
      %179 = vmatpush1.bf16.msra.mxu0 %v155
      %180 = vmatprep.subr.bf16.mxu0 0
      %181 = vmatpush1.bf16.msra.mxu0 0
      %182 = vmatprep.subr.bf16.mxu0 0
      %183 = vmatpush1.bf16.msra.mxu0 0
      %184 = vmatprep.subr.bf16.mxu0 0
      %185 = vmatpush1.bf16.msra.mxu0 0
      %186 = vmatprep.subr.bf16.mxu0 0
      %187 = vmatpush1.bf16.msra.mxu0 0
      %188 = vmatprep.subr.bf16.mxu0 0
      %189 = vmatpush1.bf16.msra.mxu0 0
      %190 = vmatprep.subr.bf16.mxu0 0
      %191 = vmatpush1.bf16.msra.mxu0 0
      %192 = vmatprep.subr.bf16.mxu0 0
      %193 = vmatpush1.bf16.msra.mxu0 0
      %194 = vmatprep.subr.bf16.mxu0 0
      %195 = vmatpush1.bf16.msra.mxu0 0
      %196 = vmatprep.mubr.bf16.mxu0 0
      %197 = vmatmul.mubr.bf16.gmra.mrb[0].mxu0 %v100
      %v198 = vpop.f32.mrb[0].mxu0
      %v199 = vadd.f32 %v66, %v198
      %v200 = vpop.f32.mrb[0].mxu0
      %v201 = vpop.f32.mrb[0].mxu0
      %v202 = vadd.f32 %v66, %v201
      %v203 = vpop.f32.mrb[0].mxu0
      %204 = vmatprep.mubr.bf16.mxu0 0
      %205 = vmatmul.mubr.bf16.gmra.mrb[0].mxu0 %v101
      %v206 = vpop.f32.mrb[0].mxu0
      %v207 = vadd.f32 %v66, %v206
      %v208 = vpop.f32.mrb[0].mxu0
      %v209 = vpop.f32.mrb[0].mxu0
      %v210 = vadd.f32 %v66, %v209
      %v211 = vpop.f32.mrb[0].mxu0
      %212 = vmatprep.mubr.bf16.mxu0 0
      %213 = vmatmul.mubr.bf16.gmra.mrb[0].mxu0 %v102
      %v214 = vpop.f32.mrb[0].mxu0
      %v215 = vadd.f32 %v66, %v214
      %v216 = vpop.f32.mrb[0].mxu0
      %v217 = vpop.f32.mrb[0].mxu0
      %v218 = vadd.f32 %v66, %v217
      %v219 = vpop.f32.mrb[0].mxu0
      %220 = vmatprep.mubr.bf16.mxu0 0
      %221 = vmatmul.mubr.bf16.gmra.mrb[0].mxu0 %v103
      %v222 = vpop.f32.mrb[0].mxu0
      %v223 = vadd.f32 %v66, %v222
      %v224 = vpop.f32.mrb[0].mxu0
      %v225 = vpop.f32.mrb[0].mxu0
      %v226 = vadd.f32 %v66, %v225
      %v227 = vpop.f32.mrb[0].mxu0
      %228 = vmatprep.mubr.bf16.mxu0 0
      %229 = vmatmul.mubr.bf16.gmra.mrb[0].mxu0 %v104
      %v230 = vpop.f32.mrb[0].mxu0
      %v231 = vadd.f32 %v66, %v230
      %v232 = vpop.f32.mrb[0].mxu0
      %v233 = vpop.f32.mrb[0].mxu0
      %v234 = vadd.f32 %v66, %v233
      %v235 = vpop.f32.mrb[0].mxu0
      %236 = vmatprep.mubr.bf16.mxu0 0
      %237 = vmatmul.mubr.bf16.gmra.mrb[0].mxu0 %v105
      %v238 = vpop.f32.mrb[0].mxu0
      %v239 = vadd.f32 %v66, %v238
      %v240 = vpop.f32.mrb[0].mxu0
      %v241 = vpop.f32.mrb[0].mxu0
      %v242 = vadd.f32 %v66, %v241
      %v243 = vpop.f32.mrb[0].mxu0
      %244 = vmatprep.mubr.bf16.mxu0 0
      %245 = vmatmul.mubr.bf16.gmra.mrb[0].mxu0 %v106
      %v246 = vpop.f32.mrb[0].mxu0
      %v247 = vadd.f32 %v66, %v246
      %v248 = vpop.f32.mrb[0].mxu0
      %v249 = vpop.f32.mrb[0].mxu0
      %v250 = vadd.f32 %v66, %v249
      %v251 = vpop.f32.mrb[0].mxu0
      %252 = vmatprep.mubr.bf16.mxu0 0
      %253 = vmatmul.mubr.bf16.gmra.mrb[0].mxu0 %v107
      %v254 = vpop.f32.mrb[0].mxu0
      %v255 = vadd.f32 %v66, %v254
      %v256 = vpop.f32.mrb[0].mxu0
      %v257 = vpop.f32.mrb[0].mxu0
      %v258 = vadd.f32 %v66, %v257
      %v259 = vpop.f32.mrb[0].mxu0
      %260 = vdwg.mxu0
      %vm261 = vcmask 7168
      %262 = vst.msk [vmem:[#allocation2] sm:$0xff] %vm261, %v199
      %263 = vst.msk [vmem:[#allocation2 + $0x8] sm:$0xff] %vm261, %v202
      %264 = vst.msk [vmem:[#allocation2 + $0x10] sm:$0xff] %vm261, %v207
      %265 = vst.msk [vmem:[#allocation2 + $0x18] sm:$0xff] %vm261, %v210
      %266 = vst.msk [vmem:[#allocation2 + $0x20] sm:$0xff] %vm261, %v215
      %267 = vst.msk [vmem:[#allocation2 + $0x28] sm:$0xff] %vm261, %v218
      %268 = vst.msk [vmem:[#allocation2 + $0x30] sm:$0xff] %vm261, %v223
      %269 = vst.msk [vmem:[#allocation2 + $0x38] sm:$0xff] %vm261, %v226
      %270 = vst.msk [vmem:[#allocation2 + $0x40] sm:$0xff] %vm261, %v231
      %271 = vst.msk [vmem:[#allocation2 + $0x48] sm:$0xff] %vm261, %v234
      %272 = vst.msk [vmem:[#allocation2 + $0x50] sm:$0xff] %vm261, %v239
      %273 = vst.msk [vmem:[#allocation2 + $0x58] sm:$0xff] %vm261, %v242
      %274 = vst.msk [vmem:[#allocation2 + $0x60] sm:$0xff] %vm261, %v247
      %275 = vst.msk [vmem:[#allocation2 + $0x68] sm:$0xff] %vm261, %v250
      %276 = vst.msk [vmem:[#allocation2 + $0x70] sm:$0xff] %vm261, %v255
      %277 = vst.msk [vmem:[#allocation2 + $0x78] sm:$0xff] %vm261, %v258
      %294 = vrot.lane.b32.xlu0 %v199, 127
      %v295 = vpop.permute.xlu0 %294
      %296 = vrot.lane.b32.xlu0 %v202, 127
      %v297 = vpop.permute.xlu0 %296
      %298 = vrot.lane.b32.xlu0 %v207, 127
      %v299 = vpop.permute.xlu0 %298
      %300 = vrot.lane.b32.xlu0 %v210, 127
      %v301 = vpop.permute.xlu0 %300
      %302 = vrot.lane.b32.xlu0 %v215, 127
      %v303 = vpop.permute.xlu0 %302
      %304 = vrot.lane.b32.xlu0 %v218, 127
      %v305 = vpop.permute.xlu0 %304
      %306 = vrot.lane.b32.xlu0 %v223, 127
      %v307 = vpop.permute.xlu0 %306
      %308 = vrot.lane.b32.xlu0 %v226, 127
      %v309 = vpop.permute.xlu0 %308
      %310 = vrot.lane.b32.xlu0 %v231, 127
      %v311 = vpop.permute.xlu0 %310
      %312 = vrot.lane.b32.xlu0 %v234, 127
      %v313 = vpop.permute.xlu0 %312
      %314 = vrot.lane.b32.xlu0 %v239, 127
      %v315 = vpop.permute.xlu0 %314
      %316 = vrot.lane.b32.xlu0 %v242, 127
      %v317 = vpop.permute.xlu0 %316
      %318 = vrot.lane.b32.xlu0 %v247, 127
      %v319 = vpop.permute.xlu0 %318
      %320 = vrot.lane.b32.xlu0 %v250, 127
      %v321 = vpop.permute.xlu0 %320
      %322 = vrot.lane.b32.xlu0 %v255, 127
      %v323 = vpop.permute.xlu0 %322
      %324 = vrot.lane.b32.xlu0 %v258, 127
      %v325 = vpop.permute.xlu0 %324
      %s342 = scalar_lea.vmem [#allocation2], 128
      %343 = vst.msk [vmem:[%s342] sm:$0xff] %vm261, %v295
      %344 = vst.msk [vmem:[%s342 + $0x8] sm:$0xff] %vm261, %v297
      %345 = vst.msk [vmem:[%s342 + $0x10] sm:$0xff] %vm261, %v299
      %346 = vst.msk [vmem:[%s342 + $0x18] sm:$0xff] %vm261, %v301
      %347 = vst.msk [vmem:[%s342 + $0x20] sm:$0xff] %vm261, %v303
      %348 = vst.msk [vmem:[%s342 + $0x28] sm:$0xff] %vm261, %v305
      %349 = vst.msk [vmem:[%s342 + $0x30] sm:$0xff] %vm261, %v307
      %350 = vst.msk [vmem:[%s342 + $0x38] sm:$0xff] %vm261, %v309
      %351 = vst.msk [vmem:[%s342 + $0x40] sm:$0xff] %vm261, %v311
      %352 = vst.msk [vmem:[%s342 + $0x48] sm:$0xff] %vm261, %v313
      %353 = vst.msk [vmem:[%s342 + $0x50] sm:$0xff] %vm261, %v315
      %354 = vst.msk [vmem:[%s342 + $0x58] sm:$0xff] %vm261, %v317
      %355 = vst.msk [vmem:[%s342 + $0x60] sm:$0xff] %vm261, %v319
      %356 = vst.msk [vmem:[%s342 + $0x68] sm:$0xff] %vm261, %v321
      %357 = vst.msk [vmem:[%s342 + $0x70] sm:$0xff] %vm261, %v323
      %358 = vst.msk [vmem:[%s342 + $0x78] sm:$0xff] %vm261, %v325
      %359 = vst.msk [vmem:[#allocation3] sm:$0xff] %vm261, -inf
      %360 = vst.msk [vmem:[#allocation3 + $0x8] sm:$0xff] %vm261, -inf
      %361 = vst.msk [vmem:[#allocation3 + $0x10] sm:$0xff] %vm261, -inf
      %362 = vst.msk [vmem:[#allocation3 + $0x18] sm:$0xff] %vm261, -inf
      %363 = vst.msk [vmem:[#allocation3 + $0x20] sm:$0xff] %vm261, -inf
      %364 = vst.msk [vmem:[#allocation3 + $0x28] sm:$0xff] %vm261, -inf
      %365 = vst.msk [vmem:[#allocation3 + $0x30] sm:$0xff] %vm261, -inf
      %366 = vst.msk [vmem:[#allocation3 + $0x38] sm:$0xff] %vm261, -inf
      %367 = vst.msk [vmem:[#allocation3 + $0x40] sm:$0xff] %vm261, -inf
      %368 = vst.msk [vmem:[#allocation3 + $0x48] sm:$0xff] %vm261, -inf
      %369 = vst.msk [vmem:[#allocation3 + $0x50] sm:$0xff] %vm261, -inf
      %370 = vst.msk [vmem:[#allocation3 + $0x58] sm:$0xff] %vm261, -inf
      %371 = vst.msk [vmem:[#allocation3 + $0x60] sm:$0xff] %vm261, -inf
      %372 = vst.msk [vmem:[#allocation3 + $0x68] sm:$0xff] %vm261, -inf
      %373 = vst.msk [vmem:[#allocation3 + $0x70] sm:$0xff] %vm261, -inf
      %374 = vst.msk [vmem:[#allocation3 + $0x78] sm:$0xff] %vm261, -inf
      %375 = vst.msk [vmem:[#allocation3 + $0x80] sm:$0xff] %vm261, -inf
      %376 = vst.msk [vmem:[#allocation3 + $0x88] sm:$0xff] %vm261, -inf
      %377 = vst.msk [vmem:[#allocation3 + $0x90] sm:$0xff] %vm261, -inf
      %378 = vst.msk [vmem:[#allocation3 + $0x98] sm:$0xff] %vm261, -inf
      %379 = vst.msk [vmem:[#allocation3 + $0xa0] sm:$0xff] %vm261, -inf
      %380 = vst.msk [vmem:[#allocation3 + $0xa8] sm:$0xff] %vm261, -inf
      %381 = vst.msk [vmem:[#allocation3 + $0xb0] sm:$0xff] %vm261, -inf
      %382 = vst.msk [vmem:[#allocation3 + $0xb8] sm:$0xff] %vm261, -inf
      %383 = vst.msk [vmem:[#allocation3 + $0xc0] sm:$0xff] %vm261, -inf
      %384 = vst.msk [vmem:[#allocation3 + $0xc8] sm:$0xff] %vm261, -inf
      %385 = vst.msk [vmem:[#allocation3 + $0xd0] sm:$0xff] %vm261, -inf
      %386 = vst.msk [vmem:[#allocation3 + $0xd8] sm:$0xff] %vm261, -inf
      %387 = vst.msk [vmem:[#allocation3 + $0xe0] sm:$0xff] %vm261, -inf
      %388 = vst.msk [vmem:[#allocation3 + $0xe8] sm:$0xff] %vm261, -inf
      %389 = vst.msk [vmem:[#allocation3 + $0xf0] sm:$0xff] %vm261, -inf
      %390 = vst.msk [vmem:[#allocation3 + $0xf8] sm:$0xff] %vm261, -inf
      %391 = vst.msk [vmem:[#allocation4] sm:$0xff] %vm261, 0.0
      %392 = vst.msk [vmem:[#allocation4 + $0x8] sm:$0xff] %vm261, 0.0
      %393 = vst.msk [vmem:[#allocation4 + $0x10] sm:$0xff] %vm261, 0.0
      %394 = vst.msk [vmem:[#allocation4 + $0x18] sm:$0xff] %vm261, 0.0
      %395 = vst.msk [vmem:[#allocation4 + $0x20] sm:$0xff] %vm261, 0.0
      %396 = vst.msk [vmem:[#allocation4 + $0x28] sm:$0xff] %vm261, 0.0
      %397 = vst.msk [vmem:[#allocation4 + $0x30] sm:$0xff] %vm261, 0.0
      %398 = vst.msk [vmem:[#allocation4 + $0x38] sm:$0xff] %vm261, 0.0
      %399 = vst.msk [vmem:[#allocation4 + $0x40] sm:$0xff] %vm261, 0.0
      %400 = vst.msk [vmem:[#allocation4 + $0x48] sm:$0xff] %vm261, 0.0
      %401 = vst.msk [vmem:[#allocation4 + $0x50] sm:$0xff] %vm261, 0.0
      %402 = vst.msk [vmem:[#allocation4 + $0x58] sm:$0xff] %vm261, 0.0
      %403 = vst.msk [vmem:[#allocation4 + $0x60] sm:$0xff] %vm261, 0.0
      %404 = vst.msk [vmem:[#allocation4 + $0x68] sm:$0xff] %vm261, 0.0
      %405 = vst.msk [vmem:[#allocation4 + $0x70] sm:$0xff] %vm261, 0.0
      %406 = vst.msk [vmem:[#allocation4 + $0x78] sm:$0xff] %vm261, 0.0
      %407 = vst.msk [vmem:[#allocation4 + $0x80] sm:$0xff] %vm261, 0.0
      %408 = vst.msk [vmem:[#allocation4 + $0x88] sm:$0xff] %vm261, 0.0
      %409 = vst.msk [vmem:[#allocation4 + $0x90] sm:$0xff] %vm261, 0.0
      %410 = vst.msk [vmem:[#allocation4 + $0x98] sm:$0xff] %vm261, 0.0
      %411 = vst.msk [vmem:[#allocation4 + $0xa0] sm:$0xff] %vm261, 0.0
      %412 = vst.msk [vmem:[#allocation4 + $0xa8] sm:$0xff] %vm261, 0.0
      %413 = vst.msk [vmem:[#allocation4 + $0xb0] sm:$0xff] %vm261, 0.0
      %414 = vst.msk [vmem:[#allocation4 + $0xb8] sm:$0xff] %vm261, 0.0
      %415 = vst.msk [vmem:[#allocation4 + $0xc0] sm:$0xff] %vm261, 0.0
      %416 = vst.msk [vmem:[#allocation4 + $0xc8] sm:$0xff] %vm261, 0.0
      %417 = vst.msk [vmem:[#allocation4 + $0xd0] sm:$0xff] %vm261, 0.0
      %418 = vst.msk [vmem:[#allocation4 + $0xd8] sm:$0xff] %vm261, 0.0
      %419 = vst.msk [vmem:[#allocation4 + $0xe0] sm:$0xff] %vm261, 0.0
      %420 = vst.msk [vmem:[#allocation4 + $0xe8] sm:$0xff] %vm261, 0.0
      %421 = vst.msk [vmem:[#allocation4 + $0xf0] sm:$0xff] %vm261, 0.0
      %422 = vst.msk [vmem:[#allocation4 + $0xf8] sm:$0xff] %vm261, 0.0
      %423 = vst [vmem:[#allocation5] sm:$0xff] 0.0
      %424 = vst [vmem:[#allocation5 + $0x8] sm:$0xff] 0.0
      %425 = vst [vmem:[#allocation5 + $0x10] sm:$0xff] 0.0
      %426 = vst [vmem:[#allocation5 + $0x18] sm:$0xff] 0.0
      %427 = vst [vmem:[#allocation5 + $0x20] sm:$0xff] 0.0
      %428 = vst [vmem:[#allocation5 + $0x28] sm:$0xff] 0.0
      %429 = vst [vmem:[#allocation5 + $0x30] sm:$0xff] 0.0
      %430 = vst [vmem:[#allocation5 + $0x38] sm:$0xff] 0.0
      %431 = vst [vmem:[#allocation5 + $0x40] sm:$0xff] 0.0
      %432 = vst [vmem:[#allocation5 + $0x48] sm:$0xff] 0.0
      %433 = vst [vmem:[#allocation5 + $0x50] sm:$0xff] 0.0
      %434 = vst [vmem:[#allocation5 + $0x58] sm:$0xff] 0.0
      %435 = vst [vmem:[#allocation5 + $0x60] sm:$0xff] 0.0
      %436 = vst [vmem:[#allocation5 + $0x68] sm:$0xff] 0.0
      %437 = vst [vmem:[#allocation5 + $0x70] sm:$0xff] 0.0
      %438 = vst [vmem:[#allocation5 + $0x78] sm:$0xff] 0.0
      %439 = vst [vmem:[#allocation5 + $0x80] sm:$0xff] 0.0
      %440 = vst [vmem:[#allocation5 + $0x88] sm:$0xff] 0.0
      %441 = vst [vmem:[#allocation5 + $0x90] sm:$0xff] 0.0
      %442 = vst [vmem:[#allocation5 + $0x98] sm:$0xff] 0.0
      %443 = vst [vmem:[#allocation5 + $0xa0] sm:$0xff] 0.0
      %444 = vst [vmem:[#allocation5 + $0xa8] sm:$0xff] 0.0
      %445 = vst [vmem:[#allocation5 + $0xb0] sm:$0xff] 0.0
      %446 = vst [vmem:[#allocation5 + $0xb8] sm:$0xff] 0.0
      %447 = vst [vmem:[#allocation5 + $0xc0] sm:$0xff] 0.0
      %448 = vst [vmem:[#allocation5 + $0xc8] sm:$0xff] 0.0
      %449 = vst [vmem:[#allocation5 + $0xd0] sm:$0xff] 0.0
      %450 = vst [vmem:[#allocation5 + $0xd8] sm:$0xff] 0.0
      %451 = vst [vmem:[#allocation5 + $0xe0] sm:$0xff] 0.0
      %452 = vst [vmem:[#allocation5 + $0xe8] sm:$0xff] 0.0
      %453 = vst [vmem:[#allocation5 + $0xf0] sm:$0xff] 0.0
      %454 = vst [vmem:[#allocation5 + $0xf8] sm:$0xff] 0.0
    $region29: #{tpu_custom_call.1} parent=1 // pred_fallthru
      _
    %v455 = vld [vmem:[%s1] sm:$0xf]
    %v456 = vld [vmem:[%s1 + $0x4] sm:$0xf]
    %v457 = vld [vmem:[%s1 + $0x8] sm:$0xf]
    %v458 = vld [vmem:[%s1 + $0xc] sm:$0xf]
    %v459 = vld [vmem:[%s1 + $0x10] sm:$0xf]
    %v460 = vld [vmem:[%s1 + $0x14] sm:$0xf]
    %v461 = vld [vmem:[%s1 + $0x18] sm:$0xf]
    %v462 = vld [vmem:[%s1 + $0x1c] sm:$0xf]
    %v463 = vld [vmem:[%s1 + $0x20] sm:$0xf]
    %v464 = vld [vmem:[%s1 + $0x24] sm:$0xf]
    %v465 = vld [vmem:[%s1 + $0x28] sm:$0xf]
    %v466 = vld [vmem:[%s1 + $0x2c] sm:$0xf]
    %v467 = vld [vmem:[%s1 + $0x30] sm:$0xf]
    %v468 = vld [vmem:[%s1 + $0x34] sm:$0xf]
    %v469 = vld [vmem:[%s1 + $0x38] sm:$0xf]
    %v470 = vld [vmem:[%s1 + $0x3c] sm:$0xf]
    %v471 = vld [vmem:[%s2] sm:$0xf]
    %v472 = vld [vmem:[%s2 + $0x4] sm:$0xf]
    %v473 = vld [vmem:[%s2 + $0x8] sm:$0xf]
    %v474 = vld [vmem:[%s2 + $0xc] sm:$0xf]
    %v475 = vld [vmem:[%s2 + $0x10] sm:$0xf]
    %v476 = vld [vmem:[%s2 + $0x14] sm:$0xf]
    %v477 = vld [vmem:[%s2 + $0x18] sm:$0xf]
    %v478 = vld [vmem:[%s2 + $0x1c] sm:$0xf]
    %v479 = vld [vmem:[%s2 + $0x20] sm:$0xf]
    %v480 = vld [vmem:[%s2 + $0x24] sm:$0xf]
    %v481 = vld [vmem:[%s2 + $0x28] sm:$0xf]
    %v482 = vld [vmem:[%s2 + $0x2c] sm:$0xf]
    %v483 = vld [vmem:[%s2 + $0x30] sm:$0xf]
    %v484 = vld [vmem:[%s2 + $0x34] sm:$0xf]
    %v485 = vld [vmem:[%s2 + $0x38] sm:$0xf]
    %v486 = vld [vmem:[%s2 + $0x3c] sm:$0xf]
    %v487 = vld [vmem:[%s4] sm:$0x1]
    %v489 = vlaneseq
    %v490 = vshrl.u32 %v489, 7
    %v491 = vsub.s32 0, %v490
    %v492 = vrot.slane %v487, %v491
    %v510 = vunpack.c.l.b16 %v455
    %v511 = vunpack.c.l.b16 %v456
    %v512 = vunpack.c.l.b16 %v457
    %v513 = vunpack.c.l.b16 %v458
    %v514 = vunpack.c.l.b16 %v459
    %v515 = vunpack.c.l.b16 %v460
    %v516 = vunpack.c.l.b16 %v461
    %v517 = vunpack.c.l.b16 %v462
    %v518 = vunpack.c.l.b16 %v463
    %v519 = vunpack.c.l.b16 %v464
    %v520 = vunpack.c.l.b16 %v465
    %v521 = vunpack.c.l.b16 %v466
    %v522 = vunpack.c.l.b16 %v467
    %v523 = vunpack.c.l.b16 %v468
    %v524 = vunpack.c.l.b16 %v469
    %v525 = vunpack.c.l.b16 %v470
    %v526 = vpack.c.b16 %v511, %v510
    %v527 = vpack.c.b16 %v513, %v512
    %v528 = vpack.c.b16 %v515, %v514
    %v529 = vpack.c.b16 %v517, %v516
    %v530 = vpack.c.b16 %v519, %v518
    %v531 = vpack.c.b16 %v521, %v520
    %v532 = vpack.c.b16 %v523, %v522
    %v533 = vpack.c.b16 %v525, %v524
    %v558 = vunpack.c.l.b16 %v471
    %v559 = vunpack.c.l.b16 %v472
    %v560 = vunpack.c.l.b16 %v473
    %v561 = vunpack.c.l.b16 %v474
    %v562 = vunpack.c.l.b16 %v475
    %v563 = vunpack.c.l.b16 %v476
    %v564 = vunpack.c.l.b16 %v477
    %v565 = vunpack.c.l.b16 %v478
    %v566 = vunpack.c.l.b16 %v479
    %v567 = vunpack.c.l.b16 %v480
    %v568 = vunpack.c.l.b16 %v481
    %v569 = vunpack.c.l.b16 %v482
    %v570 = vunpack.c.l.b16 %v483
    %v571 = vunpack.c.l.b16 %v484
    %v572 = vunpack.c.l.b16 %v485
    %v573 = vunpack.c.l.b16 %v486
    %v574 = vpack.c.b16 %v559, %v558
    %v575 = vpack.c.b16 %v561, %v560
    %v576 = vpack.c.b16 %v563, %v562
    %v577 = vpack.c.b16 %v565, %v564
    %v578 = vpack.c.b16 %v567, %v566
    %v579 = vpack.c.b16 %v569, %v568
    %v580 = vpack.c.b16 %v571, %v570
    %v581 = vpack.c.b16 %v573, %v572
    %590 = vmatprep.subr.bf16.mxu0 0
    %591 = vmatpush1.bf16.msra.mxu0 %v574
    %592 = vmatprep.subr.bf16.mxu0 0
    %593 = vmatpush1.bf16.msra.mxu0 %v575
    %594 = vmatprep.subr.bf16.mxu0 0
    %595 = vmatpush1.bf16.msra.mxu0 %v576
    %596 = vmatprep.subr.bf16.mxu0 0
    %597 = vmatpush1.bf16.msra.mxu0 %v577
    %598 = vmatprep.subr.bf16.mxu0 0
    %599 = vmatpush1.bf16.msra.mxu0 %v578
    %600 = vmatprep.subr.bf16.mxu0 0
    %601 = vmatpush1.bf16.msra.mxu0 %v579
    %602 = vmatprep.subr.bf16.mxu0 0
    %603 = vmatpush1.bf16.msra.mxu0 %v580
    %604 = vmatprep.subr.bf16.mxu0 0
    %605 = vmatpush1.bf16.msra.mxu0 %v581
    %606 = vmatprep.subr.bf16.mxu0 0
    %607 = vmatpush1.bf16.msra.mxu0 0
    %608 = vmatprep.subr.bf16.mxu0 0
    %609 = vmatpush1.bf16.msra.mxu0 0
    %610 = vmatprep.subr.bf16.mxu0 0
    %611 = vmatpush1.bf16.msra.mxu0 0
    %612 = vmatprep.subr.bf16.mxu0 0
    %613 = vmatpush1.bf16.msra.mxu0 0
    %614 = vmatprep.subr.bf16.mxu0 0
    %615 = vmatpush1.bf16.msra.mxu0 0
    %616 = vmatprep.subr.bf16.mxu0 0
    %617 = vmatpush1.bf16.msra.mxu0 0
    %618 = vmatprep.subr.bf16.mxu0 0
    %619 = vmatpush1.bf16.msra.mxu0 0
    %620 = vmatprep.subr.bf16.mxu0 0
    %621 = vmatpush1.bf16.msra.mxu0 0
    %622 = vmatprep.mubr.bf16.mxu0 0
    %623 = vmatmul.mubr.bf16.gmra.mrb[0].mxu0 %v526
    %v624 = vpop.f32.mrb[0].mxu0
    %v625 = vadd.f32 %v492, %v624
    %v626 = vpop.f32.mrb[0].mxu0
    %v627 = vpop.f32.mrb[0].mxu0
    %v628 = vadd.f32 %v492, %v627
    %v629 = vpop.f32.mrb[0].mxu0
    %630 = vmatprep.mubr.bf16.mxu0 0
    %631 = vmatmul.mubr.bf16.gmra.mrb[0].mxu0 %v527
    %v632 = vpop.f32.mrb[0].mxu0
    %v633 = vadd.f32 %v492, %v632
    %v634 = vpop.f32.mrb[0].mxu0
    %v635 = vpop.f32.mrb[0].mxu0
    %v636 = vadd.f32 %v492, %v635
    %v637 = vpop.f32.mrb[0].mxu0
    %638 = vmatprep.mubr.bf16.mxu0 0
    %639 = vmatmul.mubr.bf16.gmra.mrb[0].mxu0 %v528
    %v640 = vpop.f32.mrb[0].mxu0
    %v641 = vadd.f32 %v492, %v640
    %v642 = vpop.f32.mrb[0].mxu0
    %v643 = vpop.f32.mrb[0].mxu0
    %v644 = vadd.f32 %v492, %v643
    %v645 = vpop.f32.mrb[0].mxu0
    %646 = vmatprep.mubr.bf16.mxu0 0
    %647 = vmatmul.mubr.bf16.gmra.mrb[0].mxu0 %v529
    %v648 = vpop.f32.mrb[0].mxu0
    %v649 = vadd.f32 %v492, %v648
    %v650 = vpop.f32.mrb[0].mxu0
    %v651 = vpop.f32.mrb[0].mxu0
    %v652 = vadd.f32 %v492, %v651
    %v653 = vpop.f32.mrb[0].mxu0
    %654 = vmatprep.mubr.bf16.mxu0 0
    %655 = vmatmul.mubr.bf16.gmra.mrb[0].mxu0 %v530
    %v656 = vpop.f32.mrb[0].mxu0
    %v657 = vadd.f32 %v492, %v656
    %v658 = vpop.f32.mrb[0].mxu0
    %v659 = vpop.f32.mrb[0].mxu0
    %v660 = vadd.f32 %v492, %v659
    %v661 = vpop.f32.mrb[0].mxu0
    %662 = vmatprep.mubr.bf16.mxu0 0
    %663 = vmatmul.mubr.bf16.gmra.mrb[0].mxu0 %v531
    %v664 = vpop.f32.mrb[0].mxu0
    %v665 = vadd.f32 %v492, %v664
    %v666 = vpop.f32.mrb[0].mxu0
    %v667 = vpop.f32.mrb[0].mxu0
    %v668 = vadd.f32 %v492, %v667
    %v669 = vpop.f32.mrb[0].mxu0
    %670 = vmatprep.mubr.bf16.mxu0 0
    %671 = vmatmul.mubr.bf16.gmra.mrb[0].mxu0 %v532
    %v672 = vpop.f32.mrb[0].mxu0
    %v673 = vadd.f32 %v492, %v672
    %v674 = vpop.f32.mrb[0].mxu0
    %v675 = vpop.f32.mrb[0].mxu0
    %v676 = vadd.f32 %v492, %v675
    %v677 = vpop.f32.mrb[0].mxu0
    %678 = vmatprep.mubr.bf16.mxu0 0
    %679 = vmatmul.mubr.bf16.gmra.mrb[0].mxu0 %v533
    %v680 = vpop.f32.mrb[0].mxu0
    %v681 = vadd.f32 %v492, %v680
    %v682 = vpop.f32.mrb[0].mxu0
    %v683 = vpop.f32.mrb[0].mxu0
    %v684 = vadd.f32 %v492, %v683
    %v685 = vpop.f32.mrb[0].mxu0
    %686 = vdwg.mxu0
    %s687 = smul.u32 0, 128
    %v688 = vlaneseq
    %v689 = vshrl.u32 %v688, 7
    %v690 = vadd.s32 %v689, 8
    %v691 = vadd.s32 %v689, 16
    %v692 = vadd.s32 %v689, 24
    %v693 = vadd.s32 %v689, 32
    %v694 = vadd.s32 %v689, 40
    %v695 = vadd.s32 %v689, 48
    %v696 = vadd.s32 %v689, 56
    %v697 = vadd.s32 %v689, 64
    %v698 = vadd.s32 %v689, 72
    %v699 = vadd.s32 %v689, 80
    %v700 = vadd.s32 %v689, 88
    %v701 = vadd.s32 %v689, 96
    %v702 = vadd.s32 %v689, 104
    %v703 = vadd.s32 %v689, 112
    %v704 = vadd.s32 %v689, 120
    %v705 = vstv %s687
    %v706 = vadd.s32 %v705, %v689
    %v707 = vadd.s32 %v705, %v690
    %v708 = vadd.s32 %v705, %v691
    %v709 = vadd.s32 %v705, %v692
    %v710 = vadd.s32 %v705, %v693
    %v711 = vadd.s32 %v705, %v694
    %v712 = vadd.s32 %v705, %v695
    %v713 = vadd.s32 %v705, %v696
    %v714 = vadd.s32 %v705, %v697
    %v715 = vadd.s32 %v705, %v698
    %v716 = vadd.s32 %v705, %v699
    %v717 = vadd.s32 %v705, %v700
    %v718 = vadd.s32 %v705, %v701
    %v719 = vadd.s32 %v705, %v702
    %v720 = vadd.s32 %v705, %v703
    %v721 = vadd.s32 %v705, %v704
    %vm722 = vcmp.lt.s32.totalorder %v706, 50
    %vm723 = vcmp.lt.s32.totalorder %v707, 50
    %vm724 = vcmp.lt.s32.totalorder %v708, 50
    %vm725 = vcmp.lt.s32.totalorder %v709, 50
    %vm726 = vcmp.lt.s32.totalorder %v710, 50
    %vm727 = vcmp.lt.s32.totalorder %v711, 50
    %vm728 = vcmp.lt.s32.totalorder %v712, 50
    %vm729 = vcmp.lt.s32.totalorder %v713, 50
    %vm730 = vcmp.lt.s32.totalorder %v714, 50
    %vm731 = vcmp.lt.s32.totalorder %v715, 50
    %vm732 = vcmp.lt.s32.totalorder %v716, 50
    %vm733 = vcmp.lt.s32.totalorder %v717, 50
    %vm734 = vcmp.lt.s32.totalorder %v718, 50
    %vm735 = vcmp.lt.s32.totalorder %v719, 50
    %vm736 = vcmp.lt.s32.totalorder %v720, 50
    %vm737 = vcmp.lt.s32.totalorder %v721, 50
    %v738 = vsel %vm722, 1, 0
    %v739 = vsel %vm723, 1, 0
    %v740 = vsel %vm724, 1, 0
    %v741 = vsel %vm725, 1, 0
    %v742 = vsel %vm726, 1, 0
    %v743 = vsel %vm727, 1, 0
    %v744 = vsel %vm728, 1, 0
    %v745 = vsel %vm729, 1, 0
    %v746 = vsel %vm730, 1, 0
    %v747 = vsel %vm731, 1, 0
    %v748 = vsel %vm732, 1, 0
    %v749 = vsel %vm733, 1, 0
    %v750 = vsel %vm734, 1, 0
    %v751 = vsel %vm735, 1, 0
    %v752 = vsel %vm736, 1, 0
    %v753 = vsel %vm737, 1, 0
    %vm754 = vcmp.eq.s32.totalorder %v738, 1
    %vm755 = vcmp.eq.s32.totalorder %v739, 1
    %vm756 = vcmp.eq.s32.totalorder %v740, 1
    %vm757 = vcmp.eq.s32.totalorder %v741, 1
    %vm758 = vcmp.eq.s32.totalorder %v742, 1
    %vm759 = vcmp.eq.s32.totalorder %v743, 1
    %vm760 = vcmp.eq.s32.totalorder %v744, 1
    %vm761 = vcmp.eq.s32.totalorder %v745, 1
    %vm762 = vcmp.eq.s32.totalorder %v746, 1
    %vm763 = vcmp.eq.s32.totalorder %v747, 1
    %vm764 = vcmp.eq.s32.totalorder %v748, 1
    %vm765 = vcmp.eq.s32.totalorder %v749, 1
    %vm766 = vcmp.eq.s32.totalorder %v750, 1
    %vm767 = vcmp.eq.s32.totalorder %v751, 1
    %vm768 = vcmp.eq.s32.totalorder %v752, 1
    %vm769 = vcmp.eq.s32.totalorder %v753, 1
    %v770 = vsel %vm754, %v625, -1e+30
    %v771 = vsel %vm755, %v628, -1e+30
    %v772 = vsel %vm756, %v633, -1e+30
    %v773 = vsel %vm757, %v636, -1e+30
    %v774 = vsel %vm758, %v641, -1e+30
    %v775 = vsel %vm759, %v644, -1e+30
    %v776 = vsel %vm760, %v649, -1e+30
    %v777 = vsel %vm761, %v652, -1e+30
    %v778 = vsel %vm762, %v657, -1e+30
    %v779 = vsel %vm763, %v660, -1e+30
    %v780 = vsel %vm764, %v665, -1e+30
    %v781 = vsel %vm765, %v668, -1e+30
    %v782 = vsel %vm766, %v673, -1e+30
    %v783 = vsel %vm767, %v676, -1e+30
    %v784 = vsel %vm768, %v681, -1e+30
    %v785 = vsel %vm769, %v684, -1e+30
    %786 = vxpose.xlu0.b32.start [1/16] %v770, 128
    %787 = vxpose.xlu0.b32.cont [2/16] %v771, 128
    %788 = vxpose.xlu0.b32.cont [3/16] %v772, 128
    %789 = vxpose.xlu0.b32.cont [4/16] %v773, 128
    %790 = vxpose.xlu0.b32.cont [5/16] %v774, 128
    %791 = vxpose.xlu0.b32.cont [6/16] %v775, 128
    %792 = vxpose.xlu0.b32.cont [7/16] %v776, 128
    %793 = vxpose.xlu0.b32.cont [8/16] %v777, 128
    %794 = vxpose.xlu0.b32.cont [9/16] %v778, 128
    %795 = vxpose.xlu0.b32.cont [10/16] %v779, 128
    %796 = vxpose.xlu0.b32.cont [11/16] %v780, 128
    %797 = vxpose.xlu0.b32.cont [12/16] %v781, 128
    %798 = vxpose.xlu0.b32.cont [13/16] %v782, 128
    %799 = vxpose.xlu0.b32.cont [14/16] %v783, 128
    %800 = vxpose.xlu0.b32.cont [15/16] %v784, 128
    %801 = vxpose.xlu0.b32.end [16/16] %v785, 128
    %v802 = vpop.trf.xlu0
    %v803 = vpop.trf.xlu0
    %v804 = vpop.trf.xlu0
    %v805 = vpop.trf.xlu0
    %v806 = vpop.trf.xlu0
    %v807 = vpop.trf.xlu0
    %v808 = vpop.trf.xlu0
    %v809 = vpop.trf.xlu0
    %v810 = vpop.trf.xlu0
    %v811 = vpop.trf.xlu0
    %v812 = vpop.trf.xlu0
    %v813 = vpop.trf.xlu0
    %v814 = vpop.trf.xlu0
    %v815 = vpop.trf.xlu0
    %v816 = vpop.trf.xlu0
    %v817 = vpop.trf.xlu0
    %v818 = vld [vmem:[#allocation2] sm:$0xff]
    %v819 = vld [vmem:[#allocation2 + $0x8] sm:$0xff]
    %v820 = vld [vmem:[#allocation2 + $0x10] sm:$0xff]
    %v821 = vld [vmem:[#allocation2 + $0x18] sm:$0xff]
    %v822 = vld [vmem:[#allocation2 + $0x20] sm:$0xff]
    %v823 = vld [vmem:[#allocation2 + $0x28] sm:$0xff]
    %v824 = vld [vmem:[#allocation2 + $0x30] sm:$0xff]
    %v825 = vld [vmem:[#allocation2 + $0x38] sm:$0xff]
    %v826 = vld [vmem:[#allocation2 + $0x40] sm:$0xff]
    %v827 = vld [vmem:[#allocation2 + $0x48] sm:$0xff]
    %v828 = vld [vmem:[#allocation2 + $0x50] sm:$0xff]
    %v829 = vld [vmem:[#allocation2 + $0x58] sm:$0xff]
    %v830 = vld [vmem:[#allocation2 + $0x60] sm:$0xff]
    %v831 = vld [vmem:[#allocation2 + $0x68] sm:$0xff]
    %v832 = vld [vmem:[#allocation2 + $0x70] sm:$0xff]
    %v833 = vld [vmem:[#allocation2 + $0x78] sm:$0xff]
    %v834 = vlaneseq
    %v835 = vshrl.u32 %v834, 7
    %v836 = vsub.s32 0, %v835
    %v837 = vrot.slane %v802, %v836
    %839 = vset.pattern.permute.xlu0 0
    %840 = vperm.xlu0 %839, %v818
    %v841 = vpop.permute.xlu0 %840
    %844 = vset.pattern.permute.xlu0 0
    %845 = vperm.xlu0 %844, %v819
    %v846 = vpop.permute.xlu0 %845
    %849 = vset.pattern.permute.xlu0 0
    %850 = vperm.xlu0 %849, %v820
    %v851 = vpop.permute.xlu0 %850
    %854 = vset.pattern.permute.xlu0 0
    %855 = vperm.xlu0 %854, %v821
    %v856 = vpop.permute.xlu0 %855
    %859 = vset.pattern.permute.xlu0 0
    %860 = vperm.xlu0 %859, %v822
    %v861 = vpop.permute.xlu0 %860
    %864 = vset.pattern.permute.xlu0 0
    %865 = vperm.xlu0 %864, %v823
    %v866 = vpop.permute.xlu0 %865
    %869 = vset.pattern.permute.xlu0 0
    %870 = vperm.xlu0 %869, %v824
    %v871 = vpop.permute.xlu0 %870
    %874 = vset.pattern.permute.xlu0 0
    %875 = vperm.xlu0 %874, %v825
    %v876 = vpop.permute.xlu0 %875
    %879 = vset.pattern.permute.xlu0 0
    %880 = vperm.xlu0 %879, %v826
    %v881 = vpop.permute.xlu0 %880
    %884 = vset.pattern.permute.xlu0 0
    %885 = vperm.xlu0 %884, %v827
    %v886 = vpop.permute.xlu0 %885
    %889 = vset.pattern.permute.xlu0 0
    %890 = vperm.xlu0 %889, %v828
    %v891 = vpop.permute.xlu0 %890
    %894 = vset.pattern.permute.xlu0 0
    %895 = vperm.xlu0 %894, %v829
    %v896 = vpop.permute.xlu0 %895
    %899 = vset.pattern.permute.xlu0 0
    %900 = vperm.xlu0 %899, %v830
    %v901 = vpop.permute.xlu0 %900
    %904 = vset.pattern.permute.xlu0 0
    %905 = vperm.xlu0 %904, %v831
    %v906 = vpop.permute.xlu0 %905
    %909 = vset.pattern.permute.xlu0 0
    %910 = vperm.xlu0 %909, %v832
    %v911 = vpop.permute.xlu0 %910
    %914 = vset.pattern.permute.xlu0 0
    %915 = vperm.xlu0 %914, %v833
    %v916 = vpop.permute.xlu0 %915
    %v918 = vadd.f32 %v837, %v841
    %v919 = vadd.f32 %v837, %v846
    %v920 = vadd.f32 %v837, %v851
    %v921 = vadd.f32 %v837, %v856
    %v922 = vadd.f32 %v837, %v861
    %v923 = vadd.f32 %v837, %v866
    %v924 = vadd.f32 %v837, %v871
    %v925 = vadd.f32 %v837, %v876
    %v926 = vadd.f32 %v837, %v881
    %v927 = vadd.f32 %v837, %v886
    %v928 = vadd.f32 %v837, %v891
    %v929 = vadd.f32 %v837, %v896
    %v930 = vadd.f32 %v837, %v901
    %v931 = vadd.f32 %v837, %v906
    %v932 = vadd.f32 %v837, %v911
    %v933 = vadd.f32 %v837, %v916
    %v934 = vmul.f32 %v918, 0.01
    %v935 = vmul.f32 %v919, 0.01
    %v936 = vmul.f32 %v920, 0.01
    %v937 = vmul.f32 %v921, 0.01
    %v938 = vmul.f32 %v922, 0.01
    %v939 = vmul.f32 %v923, 0.01
    %v940 = vmul.f32 %v924, 0.01
    %v941 = vmul.f32 %v925, 0.01
    %v942 = vmul.f32 %v926, 0.01
    %v943 = vmul.f32 %v927, 0.01
    %v944 = vmul.f32 %v928, 0.01
    %v945 = vmul.f32 %v929, 0.01
    %v946 = vmul.f32 %v930, 0.01
    %v947 = vmul.f32 %v931, 0.01
    %v948 = vmul.f32 %v932, 0.01
    %v949 = vmul.f32 %v933, 0.01
    %v950 = vmax.f32 %v918, %v934
    %v951 = vmax.f32 %v919, %v935
    %v952 = vmax.f32 %v920, %v936
    %v953 = vmax.f32 %v921, %v937
    %v954 = vmax.f32 %v922, %v938
    %v955 = vmax.f32 %v923, %v939
    %v956 = vmax.f32 %v924, %v940
    %v957 = vmax.f32 %v925, %v941
    %v958 = vmax.f32 %v926, %v942
    %v959 = vmax.f32 %v927, %v943
    %v960 = vmax.f32 %v928, %v944
    %v961 = vmax.f32 %v929, %v945
    %v962 = vmax.f32 %v930, %v946
    %v963 = vmax.f32 %v931, %v947
    %v964 = vmax.f32 %v932, %v948
    %v965 = vmax.f32 %v933, %v949
    %v966 = vld [vmem:[#allocation3] sm:$0xff]
    %v967 = vld [vmem:[#allocation3 + $0x8] sm:$0xff]
    %v968 = vld [vmem:[#allocation3 + $0x10] sm:$0xff]
    %v969 = vld [vmem:[#allocation3 + $0x18] sm:$0xff]
    %v970 = vld [vmem:[#allocation3 + $0x20] sm:$0xff]
    %v971 = vld [vmem:[#allocation3 + $0x28] sm:$0xff]
    %v972 = vld [vmem:[#allocation3 + $0x30] sm:$0xff]
    %v973 = vld [vmem:[#allocation3 + $0x38] sm:$0xff]
    %v974 = vld [vmem:[#allocation3 + $0x40] sm:$0xff]
    %v975 = vld [vmem:[#allocation3 + $0x48] sm:$0xff]
    %v976 = vld [vmem:[#allocation3 + $0x50] sm:$0xff]
    %v977 = vld [vmem:[#allocation3 + $0x58] sm:$0xff]
    %v978 = vld [vmem:[#allocation3 + $0x60] sm:$0xff]
    %v979 = vld [vmem:[#allocation3 + $0x68] sm:$0xff]
    %v980 = vld [vmem:[#allocation3 + $0x70] sm:$0xff]
    %v981 = vld [vmem:[#allocation3 + $0x78] sm:$0xff]
    %982 = vmax.xlane.f32.xlu0 %v950
    %v983 = vpop.xlane.xlu0 %982
    %984 = vmax.xlane.f32.xlu0 %v951
    %v985 = vpop.xlane.xlu0 %984
    %986 = vmax.xlane.f32.xlu0 %v952
    %v987 = vpop.xlane.xlu0 %986
    %988 = vmax.xlane.f32.xlu0 %v953
    %v989 = vpop.xlane.xlu0 %988
    %990 = vmax.xlane.f32.xlu0 %v954
    %v991 = vpop.xlane.xlu0 %990
    %992 = vmax.xlane.f32.xlu0 %v955
    %v993 = vpop.xlane.xlu0 %992
    %994 = vmax.xlane.f32.xlu0 %v956
    %v995 = vpop.xlane.xlu0 %994
    %996 = vmax.xlane.f32.xlu0 %v957
    %v997 = vpop.xlane.xlu0 %996
    %998 = vmax.xlane.f32.xlu0 %v958
    %v999 = vpop.xlane.xlu0 %998
    %1000 = vmax.xlane.f32.xlu0 %v959
    %v1001 = vpop.xlane.xlu0 %1000
    %1002 = vmax.xlane.f32.xlu0 %v960
    %v1003 = vpop.xlane.xlu0 %1002
    %1004 = vmax.xlane.f32.xlu0 %v961
    %v1005 = vpop.xlane.xlu0 %1004
    %1006 = vmax.xlane.f32.xlu0 %v962
    %v1007 = vpop.xlane.xlu0 %1006
    %1008 = vmax.xlane.f32.xlu0 %v963
    %v1009 = vpop.xlane.xlu0 %1008
    %1010 = vmax.xlane.f32.xlu0 %v964
    %v1011 = vpop.xlane.xlu0 %1010
    %1012 = vmax.xlane.f32.xlu0 %v965
    %v1013 = vpop.xlane.xlu0 %1012
    %v1014 = vmax.f32 %v966, %v983
    %v1015 = vmax.f32 %v967, %v985
    %v1016 = vmax.f32 %v968, %v987
    %v1017 = vmax.f32 %v969, %v989
    %v1018 = vmax.f32 %v970, %v991
    %v1019 = vmax.f32 %v971, %v993
    %v1020 = vmax.f32 %v972, %v995
    %v1021 = vmax.f32 %v973, %v997
    %v1022 = vmax.f32 %v974, %v999
    %v1023 = vmax.f32 %v975, %v1001
    %v1024 = vmax.f32 %v976, %v1003
    %v1025 = vmax.f32 %v977, %v1005
    %v1026 = vmax.f32 %v978, %v1007
    %v1027 = vmax.f32 %v979, %v1009
    %v1028 = vmax.f32 %v980, %v1011
    %v1029 = vmax.f32 %v981, %v1013
    %v1030 = vsub.f32 %v966, %v1014
    %v1031 = vsub.f32 %v967, %v1015
    %v1032 = vsub.f32 %v968, %v1016
    %v1033 = vsub.f32 %v969, %v1017
    %v1034 = vsub.f32 %v970, %v1018
    %v1035 = vsub.f32 %v971, %v1019
    %v1036 = vsub.f32 %v972, %v1020
    %v1037 = vsub.f32 %v973, %v1021
    %v1038 = vsub.f32 %v974, %v1022
    %v1039 = vsub.f32 %v975, %v1023
    %v1040 = vsub.f32 %v976, %v1024
    %v1041 = vsub.f32 %v977, %v1025
    %v1042 = vsub.f32 %v978, %v1026
    %v1043 = vsub.f32 %v979, %v1027
    %v1044 = vsub.f32 %v980, %v1028
    %v1045 = vsub.f32 %v981, %v1029
    %v1046 = vmul.f32 %v1030, 1.442695
    %v1047 = vpow.pop %v1046
    %v1048 = vmul.f32 %v1031, 1.442695
    %v1049 = vpow.pop %v1048
    %v1050 = vmul.f32 %v1032, 1.442695
    %v1051 = vpow.pop %v1050
    %v1052 = vmul.f32 %v1033, 1.442695
    %v1053 = vpow.pop %v1052
    %v1054 = vmul.f32 %v1034, 1.442695
    %v1055 = vpow.pop %v1054
    %v1056 = vmul.f32 %v1035, 1.442695
    %v1057 = vpow.pop %v1056
    %v1058 = vmul.f32 %v1036, 1.442695
    %v1059 = vpow.pop %v1058
    %v1060 = vmul.f32 %v1037, 1.442695
    %v1061 = vpow.pop %v1060
    %v1062 = vmul.f32 %v1038, 1.442695
    %v1063 = vpow.pop %v1062
    %v1064 = vmul.f32 %v1039, 1.442695
    %v1065 = vpow.pop %v1064
    %v1066 = vmul.f32 %v1040, 1.442695
    %v1067 = vpow.pop %v1066
    %v1068 = vmul.f32 %v1041, 1.442695
    %v1069 = vpow.pop %v1068
    %v1070 = vmul.f32 %v1042, 1.442695
    %v1071 = vpow.pop %v1070
    %v1072 = vmul.f32 %v1043, 1.442695
    %v1073 = vpow.pop %v1072
    %v1074 = vmul.f32 %v1044, 1.442695
    %v1075 = vpow.pop %v1074
    %v1076 = vmul.f32 %v1045, 1.442695
    %v1077 = vpow.pop %v1076
    %1079 = vset.pattern.permute.xlu0 0
    %1080 = vperm.xlu0 %1079, %v1014
    %v1081 = vpop.permute.xlu0 %1080
    %1084 = vset.pattern.permute.xlu0 0
    %1085 = vperm.xlu0 %1084, %v1015
    %v1086 = vpop.permute.xlu0 %1085
    %1089 = vset.pattern.permute.xlu0 0
    %1090 = vperm.xlu0 %1089, %v1016
    %v1091 = vpop.permute.xlu0 %1090
    %1094 = vset.pattern.permute.xlu0 0
    %1095 = vperm.xlu0 %1094, %v1017
    %v1096 = vpop.permute.xlu0 %1095
    %1099 = vset.pattern.permute.xlu0 0
    %1100 = vperm.xlu0 %1099, %v1018
    %v1101 = vpop.permute.xlu0 %1100
    %1104 = vset.pattern.permute.xlu0 0
    %1105 = vperm.xlu0 %1104, %v1019
    %v1106 = vpop.permute.xlu0 %1105
    %1109 = vset.pattern.permute.xlu0 0
    %1110 = vperm.xlu0 %1109, %v1020
    %v1111 = vpop.permute.xlu0 %1110
    %1114 = vset.pattern.permute.xlu0 0
    %1115 = vperm.xlu0 %1114, %v1021
    %v1116 = vpop.permute.xlu0 %1115
    %1119 = vset.pattern.permute.xlu0 0
    %1120 = vperm.xlu0 %1119, %v1022
    %v1121 = vpop.permute.xlu0 %1120
    %1124 = vset.pattern.permute.xlu0 0
    %1125 = vperm.xlu0 %1124, %v1023
    %v1126 = vpop.permute.xlu0 %1125
    %1129 = vset.pattern.permute.xlu0 0
    %1130 = vperm.xlu0 %1129, %v1024
    %v1131 = vpop.permute.xlu0 %1130
    %1134 = vset.pattern.permute.xlu0 0
    %1135 = vperm.xlu0 %1134, %v1025
    %v1136 = vpop.permute.xlu0 %1135
    %1139 = vset.pattern.permute.xlu0 0
    %1140 = vperm.xlu0 %1139, %v1026
    %v1141 = vpop.permute.xlu0 %1140
    %1144 = vset.pattern.permute.xlu0 0
    %1145 = vperm.xlu0 %1144, %v1027
    %v1146 = vpop.permute.xlu0 %1145
    %1149 = vset.pattern.permute.xlu0 0
    %1150 = vperm.xlu0 %1149, %v1028
    %v1151 = vpop.permute.xlu0 %1150
    %1154 = vset.pattern.permute.xlu0 0
    %1155 = vperm.xlu0 %1154, %v1029
    %v1156 = vpop.permute.xlu0 %1155
    %v1158 = vsub.f32 %v950, %v1081
    %v1159 = vsub.f32 %v951, %v1086
    %v1160 = vsub.f32 %v952, %v1091
    %v1161 = vsub.f32 %v953, %v1096
    %v1162 = vsub.f32 %v954, %v1101
    %v1163 = vsub.f32 %v955, %v1106
    %v1164 = vsub.f32 %v956, %v1111
    %v1165 = vsub.f32 %v957, %v1116
    %v1166 = vsub.f32 %v958, %v1121
    %v1167 = vsub.f32 %v959, %v1126
    %v1168 = vsub.f32 %v960, %v1131
    %v1169 = vsub.f32 %v961, %v1136
    %v1170 = vsub.f32 %v962, %v1141
    %v1171 = vsub.f32 %v963, %v1146
    %v1172 = vsub.f32 %v964, %v1151
    %v1173 = vsub.f32 %v965, %v1156
    %v1174 = vpack.c.bf16 %v1159, %v1158
    %v1175 = vpack.c.bf16 %v1161, %v1160
    %v1176 = vpack.c.bf16 %v1163, %v1162
    %v1177 = vpack.c.bf16 %v1165, %v1164
    %v1178 = vpack.c.bf16 %v1167, %v1166
    %v1179 = vpack.c.bf16 %v1169, %v1168
    %v1180 = vpack.c.bf16 %v1171, %v1170
    %v1181 = vpack.c.bf16 %v1173, %v1172
    %v1183 = vmul.bf16 %v1174, 1069105081
    %v1184 = vpow.bf16.pop %v1183
    %v1186 = vmul.bf16 %v1175, 1069105081
    %v1187 = vpow.bf16.pop %v1186
    %v1189 = vmul.bf16 %v1176, 1069105081
    %v1190 = vpow.bf16.pop %v1189
    %v1192 = vmul.bf16 %v1177, 1069105081
    %v1193 = vpow.bf16.pop %v1192
    %v1195 = vmul.bf16 %v1178, 1069105081
    %v1196 = vpow.bf16.pop %v1195
    %v1198 = vmul.bf16 %v1179, 1069105081
    %v1199 = vpow.bf16.pop %v1198
    %v1201 = vmul.bf16 %v1180, 1069105081
    %v1202 = vpow.bf16.pop %v1201
    %v1204 = vmul.bf16 %v1181, 1069105081
    %v1205 = vpow.bf16.pop %v1204
    %v1206 = vld [vmem:[#allocation4] sm:$0xff]
    %v1207 = vld [vmem:[#allocation4 + $0x8] sm:$0xff]
    %v1208 = vld [vmem:[#allocation4 + $0x10] sm:$0xff]
    %v1209 = vld [vmem:[#allocation4 + $0x18] sm:$0xff]
    %v1210 = vld [vmem:[#allocation4 + $0x20] sm:$0xff]
    %v1211 = vld [vmem:[#allocation4 + $0x28] sm:$0xff]
    %v1212 = vld [vmem:[#allocation4 + $0x30] sm:$0xff]
    %v1213 = vld [vmem:[#allocation4 + $0x38] sm:$0xff]
    %v1214 = vld [vmem:[#allocation4 + $0x40] sm:$0xff]
    %v1215 = vld [vmem:[#allocation4 + $0x48] sm:$0xff]
    %v1216 = vld [vmem:[#allocation4 + $0x50] sm:$0xff]
    %v1217 = vld [vmem:[#allocation4 + $0x58] sm:$0xff]
    %v1218 = vld [vmem:[#allocation4 + $0x60] sm:$0xff]
    %v1219 = vld [vmem:[#allocation4 + $0x68] sm:$0xff]
    %v1220 = vld [vmem:[#allocation4 + $0x70] sm:$0xff]
    %v1221 = vld [vmem:[#allocation4 + $0x78] sm:$0xff]
    %v1222 = vmul.f32 %v1047, %v1206
    %v1223 = vmul.f32 %v1049, %v1207
    %v1224 = vmul.f32 %v1051, %v1208
    %v1225 = vmul.f32 %v1053, %v1209
    %v1226 = vmul.f32 %v1055, %v1210
    %v1227 = vmul.f32 %v1057, %v1211
    %v1228 = vmul.f32 %v1059, %v1212
    %v1229 = vmul.f32 %v1061, %v1213
    %v1230 = vmul.f32 %v1063, %v1214
    %v1231 = vmul.f32 %v1065, %v1215
    %v1232 = vmul.f32 %v1067, %v1216
    %v1233 = vmul.f32 %v1069, %v1217
    %v1234 = vmul.f32 %v1071, %v1218
    %v1235 = vmul.f32 %v1073, %v1219
    %v1236 = vmul.f32 %v1075, %v1220
    %v1237 = vmul.f32 %v1077, %v1221
    %v1238 = vunpack.c.l.bf16 %v1184
    %v1239 = vunpack.c.h.bf16 %v1184
    %v1240 = vunpack.c.l.bf16 %v1187
    %v1241 = vunpack.c.h.bf16 %v1187
    %v1242 = vunpack.c.l.bf16 %v1190
    %v1243 = vunpack.c.h.bf16 %v1190
    %v1244 = vunpack.c.l.bf16 %v1193
    %v1245 = vunpack.c.h.bf16 %v1193
    %v1246 = vunpack.c.l.bf16 %v1196
    %v1247 = vunpack.c.h.bf16 %v1196
    %v1248 = vunpack.c.l.bf16 %v1199
    %v1249 = vunpack.c.h.bf16 %v1199
    %v1250 = vunpack.c.l.bf16 %v1202
    %v1251 = vunpack.c.h.bf16 %v1202
    %v1252 = vunpack.c.l.bf16 %v1205
    %v1253 = vunpack.c.h.bf16 %v1205
    %1254 = vadd.xlane.f32.xlu0 %v1238
    %v1255 = vpop.xlane.xlu0 %1254
    %1256 = vadd.xlane.f32.xlu0 %v1239
    %v1257 = vpop.xlane.xlu0 %1256
    %1258 = vadd.xlane.f32.xlu0 %v1240
    %v1259 = vpop.xlane.xlu0 %1258
    %1260 = vadd.xlane.f32.xlu0 %v1241
    %v1261 = vpop.xlane.xlu0 %1260
    %1262 = vadd.xlane.f32.xlu0 %v1242
    %v1263 = vpop.xlane.xlu0 %1262
    %1264 = vadd.xlane.f32.xlu0 %v1243
    %v1265 = vpop.xlane.xlu0 %1264
    %1266 = vadd.xlane.f32.xlu0 %v1244
    %v1267 = vpop.xlane.xlu0 %1266
    %1268 = vadd.xlane.f32.xlu0 %v1245
    %v1269 = vpop.xlane.xlu0 %1268
    %1270 = vadd.xlane.f32.xlu0 %v1246
    %v1271 = vpop.xlane.xlu0 %1270
    %1272 = vadd.xlane.f32.xlu0 %v1247
    %v1273 = vpop.xlane.xlu0 %1272
    %1274 = vadd.xlane.f32.xlu0 %v1248
    %v1275 = vpop.xlane.xlu0 %1274
    %1276 = vadd.xlane.f32.xlu0 %v1249
    %v1277 = vpop.xlane.xlu0 %1276
    %1278 = vadd.xlane.f32.xlu0 %v1250
    %v1279 = vpop.xlane.xlu0 %1278
    %1280 = vadd.xlane.f32.xlu0 %v1251
    %v1281 = vpop.xlane.xlu0 %1280
    %1282 = vadd.xlane.f32.xlu0 %v1252
    %v1283 = vpop.xlane.xlu0 %1282
    %1284 = vadd.xlane.f32.xlu0 %v1253
    %v1285 = vpop.xlane.xlu0 %1284
    %v1286 = vadd.f32 %v1222, %v1255
    %v1287 = vadd.f32 %v1223, %v1257
    %v1288 = vadd.f32 %v1224, %v1259
    %v1289 = vadd.f32 %v1225, %v1261
    %v1290 = vadd.f32 %v1226, %v1263
    %v1291 = vadd.f32 %v1227, %v1265
    %v1292 = vadd.f32 %v1228, %v1267
    %v1293 = vadd.f32 %v1229, %v1269
    %v1294 = vadd.f32 %v1230, %v1271
    %v1295 = vadd.f32 %v1231, %v1273
    %v1296 = vadd.f32 %v1232, %v1275
    %v1297 = vadd.f32 %v1233, %v1277
    %v1298 = vadd.f32 %v1234, %v1279
    %v1299 = vadd.f32 %v1235, %v1281
    %v1300 = vadd.f32 %v1236, %v1283
    %v1301 = vadd.f32 %v1237, %v1285
    %vm1302 = vcmask 7168
    %1303 = vst.msk [vmem:[#allocation4] sm:$0xff] %vm1302, %v1286
    %1304 = vst.msk [vmem:[#allocation4 + $0x8] sm:$0xff] %vm1302, %v1287
    %1305 = vst.msk [vmem:[#allocation4 + $0x10] sm:$0xff] %vm1302, %v1288
    %1306 = vst.msk [vmem:[#allocation4 + $0x18] sm:$0xff] %vm1302, %v1289
    %1307 = vst.msk [vmem:[#allocation4 + $0x20] sm:$0xff] %vm1302, %v1290
    %1308 = vst.msk [vmem:[#allocation4 + $0x28] sm:$0xff] %vm1302, %v1291
    %1309 = vst.msk [vmem:[#allocation4 + $0x30] sm:$0xff] %vm1302, %v1292
    %1310 = vst.msk [vmem:[#allocation4 + $0x38] sm:$0xff] %vm1302, %v1293
    %1311 = vst.msk [vmem:[#allocation4 + $0x40] sm:$0xff] %vm1302, %v1294
    %1312 = vst.msk [vmem:[#allocation4 + $0x48] sm:$0xff] %vm1302, %v1295
    %1313 = vst.msk [vmem:[#allocation4 + $0x50] sm:$0xff] %vm1302, %v1296
    %1314 = vst.msk [vmem:[#allocation4 + $0x58] sm:$0xff] %vm1302, %v1297
    %1315 = vst.msk [vmem:[#allocation4 + $0x60] sm:$0xff] %vm1302, %v1298
    %1316 = vst.msk [vmem:[#allocation4 + $0x68] sm:$0xff] %vm1302, %v1299
    %1317 = vst.msk [vmem:[#allocation4 + $0x70] sm:$0xff] %vm1302, %v1300
    %1318 = vst.msk [vmem:[#allocation4 + $0x78] sm:$0xff] %vm1302, %v1301
    %1319 = vst.msk [vmem:[#allocation3] sm:$0xff] %vm1302, %v1014
    %1320 = vst.msk [vmem:[#allocation3 + $0x8] sm:$0xff] %vm1302, %v1015
    %1321 = vst.msk [vmem:[#allocation3 + $0x10] sm:$0xff] %vm1302, %v1016
    %1322 = vst.msk [vmem:[#allocation3 + $0x18] sm:$0xff] %vm1302, %v1017
    %1323 = vst.msk [vmem:[#allocation3 + $0x20] sm:$0xff] %vm1302, %v1018
    %1324 = vst.msk [vmem:[#allocation3 + $0x28] sm:$0xff] %vm1302, %v1019
    %1325 = vst.msk [vmem:[#allocation3 + $0x30] sm:$0xff] %vm1302, %v1020
    %1326 = vst.msk [vmem:[#allocation3 + $0x38] sm:$0xff] %vm1302, %v1021
    %1327 = vst.msk [vmem:[#allocation3 + $0x40] sm:$0xff] %vm1302, %v1022
    %1328 = vst.msk [vmem:[#allocation3 + $0x48] sm:$0xff] %vm1302, %v1023
    %1329 = vst.msk [vmem:[#allocation3 + $0x50] sm:$0xff] %vm1302, %v1024
    %1330 = vst.msk [vmem:[#allocation3 + $0x58] sm:$0xff] %vm1302, %v1025
    %1331 = vst.msk [vmem:[#allocation3 + $0x60] sm:$0xff] %vm1302, %v1026
    %1332 = vst.msk [vmem:[#allocation3 + $0x68] sm:$0xff] %vm1302, %v1027
    %1333 = vst.msk [vmem:[#allocation3 + $0x70] sm:$0xff] %vm1302, %v1028
    %1334 = vst.msk [vmem:[#allocation3 + $0x78] sm:$0xff] %vm1302, %v1029
    %1335 = vst [vmem:[#allocation6] sm:$0xff] %v1184
    %1336 = vst [vmem:[#allocation6 + $0x8] sm:$0xff] %v1187
    %1337 = vst [vmem:[#allocation6 + $0x10] sm:$0xff] %v1190
    %1338 = vst [vmem:[#allocation6 + $0x18] sm:$0xff] %v1193
    %1339 = vst [vmem:[#allocation6 + $0x20] sm:$0xff] %v1196
    %1340 = vst [vmem:[#allocation6 + $0x28] sm:$0xff] %v1199
    %1341 = vst [vmem:[#allocation6 + $0x30] sm:$0xff] %v1202
    %1342 = vst [vmem:[#allocation6 + $0x38] sm:$0xff] %v1205
    %s1343 = scalar_lea.vmem [#allocation2], 128
    %v1344 = vld [vmem:[%s1343] sm:$0xff]
    %v1345 = vld [vmem:[%s1343 + $0x8] sm:$0xff]
    %v1346 = vld [vmem:[%s1343 + $0x10] sm:$0xff]
    %v1347 = vld [vmem:[%s1343 + $0x18] sm:$0xff]
    %v1348 = vld [vmem:[%s1343 + $0x20] sm:$0xff]
    %v1349 = vld [vmem:[%s1343 + $0x28] sm:$0xff]
    %v1350 = vld [vmem:[%s1343 + $0x30] sm:$0xff]
    %v1351 = vld [vmem:[%s1343 + $0x38] sm:$0xff]
    %v1352 = vld [vmem:[%s1343 + $0x40] sm:$0xff]
    %v1353 = vld [vmem:[%s1343 + $0x48] sm:$0xff]
    %v1354 = vld [vmem:[%s1343 + $0x50] sm:$0xff]
    %v1355 = vld [vmem:[%s1343 + $0x58] sm:$0xff]
    %v1356 = vld [vmem:[%s1343 + $0x60] sm:$0xff]
    %v1357 = vld [vmem:[%s1343 + $0x68] sm:$0xff]
    %v1358 = vld [vmem:[%s1343 + $0x70] sm:$0xff]
    %v1359 = vld [vmem:[%s1343 + $0x78] sm:$0xff]
    %v1360 = vlaneseq
    %v1361 = vshrl.u32 %v1360, 7
    %v1362 = vsub.s32 1, %v1361
    %v1363 = vrot.slane %v802, %v1362
    %1365 = vset.pattern.permute.xlu0 0
    %1366 = vperm.xlu0 %1365, %v1344
    %v1367 = vpop.permute.xlu0 %1366
    %1370 = vset.pattern.permute.xlu0 0
    %1371 = vperm.xlu0 %1370, %v1345
    %v1372 = vpop.permute.xlu0 %1371
    %1375 = vset.pattern.permute.xlu0 0
    %1376 = vperm.xlu0 %1375, %v1346
    %v1377 = vpop.permute.xlu0 %1376
    %1380 = vset.pattern.permute.xlu0 0
    %1381 = vperm.xlu0 %1380, %v1347
    %v1382 = vpop.permute.xlu0 %1381
    %1385 = vset.pattern.permute.xlu0 0
    %1386 = vperm.xlu0 %1385, %v1348
    %v1387 = vpop.permute.xlu0 %1386
    %1390 = vset.pattern.permute.xlu0 0
    %1391 = vperm.xlu0 %1390, %v1349
    %v1392 = vpop.permute.xlu0 %1391
    %1395 = vset.pattern.permute.xlu0 0
    %1396 = vperm.xlu0 %1395, %v1350
    %v1397 = vpop.permute.xlu0 %1396
    %1400 = vset.pattern.permute.xlu0 0
    %1401 = vperm.xlu0 %1400, %v1351
    %v1402 = vpop.permute.xlu0 %1401
    %1405 = vset.pattern.permute.xlu0 0
    %1406 = vperm.xlu0 %1405, %v1352
    %v1407 = vpop.permute.xlu0 %1406
    %1410 = vset.pattern.permute.xlu0 0
    %1411 = vperm.xlu0 %1410, %v1353
    %v1412 = vpop.permute.xlu0 %1411
    %1415 = vset.pattern.permute.xlu0 0
    %1416 = vperm.xlu0 %1415, %v1354
    %v1417 = vpop.permute.xlu0 %1416
    %1420 = vset.pattern.permute.xlu0 0
    %1421 = vperm.xlu0 %1420, %v1355
    %v1422 = vpop.permute.xlu0 %1421
    %1425 = vset.pattern.permute.xlu0 0
    %1426 = vperm.xlu0 %1425, %v1356
    %v1427 = vpop.permute.xlu0 %1426
    %1430 = vset.pattern.permute.xlu0 0
    %1431 = vperm.xlu0 %1430, %v1357
    %v1432 = vpop.permute.xlu0 %1431
    %1435 = vset.pattern.permute.xlu0 0
    %1436 = vperm.xlu0 %1435, %v1358
    %v1437 = vpop.permute.xlu0 %1436
    %1440 = vset.pattern.permute.xlu0 0
    %1441 = vperm.xlu0 %1440, %v1359
    %v1442 = vpop.permute.xlu0 %1441
    %v1444 = vadd.f32 %v1363, %v1367
    %v1445 = vadd.f32 %v1363, %v1372
    %v1446 = vadd.f32 %v1363, %v1377
    %v1447 = vadd.f32 %v1363, %v1382
    %v1448 = vadd.f32 %v1363, %v1387
    %v1449 = vadd.f32 %v1363, %v1392
    %v1450 = vadd.f32 %v1363, %v1397
    %v1451 = vadd.f32 %v1363, %v1402
    %v1452 = vadd.f32 %v1363, %v1407
    %v1453 = vadd.f32 %v1363, %v1412
    %v1454 = vadd.f32 %v1363, %v1417
    %v1455 = vadd.f32 %v1363, %v1422
    %v1456 = vadd.f32 %v1363, %v1427
    %v1457 = vadd.f32 %v1363, %v1432
    %v1458 = vadd.f32 %v1363, %v1437
    %v1459 = vadd.f32 %v1363, %v1442
    %v1460 = vmul.f32 %v1444, 0.01
    %v1461 = vmul.f32 %v1445, 0.01
    %v1462 = vmul.f32 %v1446, 0.01
    %v1463 = vmul.f32 %v1447, 0.01
    %v1464 = vmul.f32 %v1448, 0.01
    %v1465 = vmul.f32 %v1449, 0.01
    %v1466 = vmul.f32 %v1450, 0.01
    %v1467 = vmul.f32 %v1451, 0.01
    %v1468 = vmul.f32 %v1452, 0.01
    %v1469 = vmul.f32 %v1453, 0.01
    %v1470 = vmul.f32 %v1454, 0.01
    %v1471 = vmul.f32 %v1455, 0.01
    %v1472 = vmul.f32 %v1456, 0.01
    %v1473 = vmul.f32 %v1457, 0.01
    %v1474 = vmul.f32 %v1458, 0.01
    %v1475 = vmul.f32 %v1459, 0.01
    %v1476 = vmax.f32 %v1444, %v1460
    %v1477 = vmax.f32 %v1445, %v1461
    %v1478 = vmax.f32 %v1446, %v1462
    %v1479 = vmax.f32 %v1447, %v1463
    %v1480 = vmax.f32 %v1448, %v1464
    %v1481 = vmax.f32 %v1449, %v1465
    %v1482 = vmax.f32 %v1450, %v1466
    %v1483 = vmax.f32 %v1451, %v1467
    %v1484 = vmax.f32 %v1452, %v1468
    %v1485 = vmax.f32 %v1453, %v1469
    %v1486 = vmax.f32 %v1454, %v1470
    %v1487 = vmax.f32 %v1455, %v1471
    %v1488 = vmax.f32 %v1456, %v1472
    %v1489 = vmax.f32 %v1457, %v1473
    %v1490 = vmax.f32 %v1458, %v1474
    %v1491 = vmax.f32 %v1459, %v1475
    %s1492 = scalar_lea.vmem [#allocation3], 128
    %v1493 = vld [vmem:[%s1492] sm:$0xff]
    %v1494 = vld [vmem:[%s1492 + $0x8] sm:$0xff]
    %v1495 = vld [vmem:[%s1492 + $0x10] sm:$0xff]
    %v1496 = vld [vmem:[%s1492 + $0x18] sm:$0xff]
    %v1497 = vld [vmem:[%s1492 + $0x20] sm:$0xff]
    %v1498 = vld [vmem:[%s1492 + $0x28] sm:$0xff]
    %v1499 = vld [vmem:[%s1492 + $0x30] sm:$0xff]
    %v1500 = vld [vmem:[%s1492 + $0x38] sm:$0xff]
    %v1501 = vld [vmem:[%s1492 + $0x40] sm:$0xff]
    %v1502 = vld [vmem:[%s1492 + $0x48] sm:$0xff]
    %v1503 = vld [vmem:[%s1492 + $0x50] sm:$0xff]
    %v1504 = vld [vmem:[%s1492 + $0x58] sm:$0xff]
    %v1505 = vld [vmem:[%s1492 + $0x60] sm:$0xff]
    %v1506 = vld [vmem:[%s1492 + $0x68] sm:$0xff]
    %v1507 = vld [vmem:[%s1492 + $0x70] sm:$0xff]
    %v1508 = vld [vmem:[%s1492 + $0x78] sm:$0xff]
    %1509 = vmax.xlane.f32.xlu0 %v1476
    %v1510 = vpop.xlane.xlu0 %1509
    %1511 = vmax.xlane.f32.xlu0 %v1477
    %v1512 = vpop.xlane.xlu0 %1511
    %1513 = vmax.xlane.f32.xlu0 %v1478
    %v1514 = vpop.xlane.xlu0 %1513
    %1515 = vmax.xlane.f32.xlu0 %v1479
    %v1516 = vpop.xlane.xlu0 %1515
    %1517 = vmax.xlane.f32.xlu0 %v1480
    %v1518 = vpop.xlane.xlu0 %1517
    %1519 = vmax.xlane.f32.xlu0 %v1481
    %v1520 = vpop.xlane.xlu0 %1519
    %1521 = vmax.xlane.f32.xlu0 %v1482
    %v1522 = vpop.xlane.xlu0 %1521
    %1523 = vmax.xlane.f32.xlu0 %v1483
    %v1524 = vpop.xlane.xlu0 %1523
    %1525 = vmax.xlane.f32.xlu0 %v1484
    %v1526 = vpop.xlane.xlu0 %1525
    %1527 = vmax.xlane.f32.xlu0 %v1485
    %v1528 = vpop.xlane.xlu0 %1527
    %1529 = vmax.xlane.f32.xlu0 %v1486
    %v1530 = vpop.xlane.xlu0 %1529
    %1531 = vmax.xlane.f32.xlu0 %v1487
    %v1532 = vpop.xlane.xlu0 %1531
    %1533 = vmax.xlane.f32.xlu0 %v1488
    %v1534 = vpop.xlane.xlu0 %1533
    %1535 = vmax.xlane.f32.xlu0 %v1489
    %v1536 = vpop.xlane.xlu0 %1535
    %1537 = vmax.xlane.f32.xlu0 %v1490
    %v1538 = vpop.xlane.xlu0 %1537
    %1539 = vmax.xlane.f32.xlu0 %v1491
    %v1540 = vpop.xlane.xlu0 %1539
    %v1541 = vmax.f32 %v1493, %v1510
    %v1542 = vmax.f32 %v1494, %v1512
    %v1543 = vmax.f32 %v1495, %v1514
    %v1544 = vmax.f32 %v1496, %v1516
    %v1545 = vmax.f32 %v1497, %v1518
    %v1546 = vmax.f32 %v1498, %v1520
    %v1547 = vmax.f32 %v1499, %v1522
    %v1548 = vmax.f32 %v1500, %v1524
    %v1549 = vmax.f32 %v1501, %v1526
    %v1550 = vmax.f32 %v1502, %v1528
    %v1551 = vmax.f32 %v1503, %v1530
    %v1552 = vmax.f32 %v1504, %v1532
    %v1553 = vmax.f32 %v1505, %v1534
    %v1554 = vmax.f32 %v1506, %v1536
    %v1555 = vmax.f32 %v1507, %v1538
    %v1556 = vmax.f32 %v1508, %v1540
    %v1557 = vsub.f32 %v1493, %v1541
    %v1558 = vsub.f32 %v1494, %v1542
    %v1559 = vsub.f32 %v1495, %v1543
    %v1560 = vsub.f32 %v1496, %v1544
    %v1561 = vsub.f32 %v1497, %v1545
    %v1562 = vsub.f32 %v1498, %v1546
    %v1563 = vsub.f32 %v1499, %v1547
    %v1564 = vsub.f32 %v1500, %v1548
    %v1565 = vsub.f32 %v1501, %v1549
    %v1566 = vsub.f32 %v1502, %v1550
    %v1567 = vsub.f32 %v1503, %v1551
    %v1568 = vsub.f32 %v1504, %v1552
    %v1569 = vsub.f32 %v1505, %v1553
    %v1570 = vsub.f32 %v1506, %v1554
    %v1571 = vsub.f32 %v1507, %v1555
    %v1572 = vsub.f32 %v1508, %v1556
    %v1573 = vmul.f32 %v1557, 1.442695
    %v1574 = vpow.pop %v1573
    %v1575 = vmul.f32 %v1558, 1.442695
    %v1576 = vpow.pop %v1575
    %v1577 = vmul.f32 %v1559, 1.442695
    %v1578 = vpow.pop %v1577
    %v1579 = vmul.f32 %v1560, 1.442695
    %v1580 = vpow.pop %v1579
    %v1581 = vmul.f32 %v1561, 1.442695
    %v1582 = vpow.pop %v1581
    %v1583 = vmul.f32 %v1562, 1.442695
    %v1584 = vpow.pop %v1583
    %v1585 = vmul.f32 %v1563, 1.442695
    %v1586 = vpow.pop %v1585
    %v1587 = vmul.f32 %v1564, 1.442695
    %v1588 = vpow.pop %v1587
    %v1589 = vmul.f32 %v1565, 1.442695
    %v1590 = vpow.pop %v1589
    %v1591 = vmul.f32 %v1566, 1.442695
    %v1592 = vpow.pop %v1591
    %v1593 = vmul.f32 %v1567, 1.442695
    %v1594 = vpow.pop %v1593
    %v1595 = vmul.f32 %v1568, 1.442695
    %v1596 = vpow.pop %v1595
    %v1597 = vmul.f32 %v1569, 1.442695
    %v1598 = vpow.pop %v1597
    %v1599 = vmul.f32 %v1570, 1.442695
    %v1600 = vpow.pop %v1599
    %v1601 = vmul.f32 %v1571, 1.442695
    %v1602 = vpow.pop %v1601
    %v1603 = vmul.f32 %v1572, 1.442695
    %v1604 = vpow.pop %v1603
    %1606 = vset.pattern.permute.xlu0 0
    %1607 = vperm.xlu0 %1606, %v1541
    %v1608 = vpop.permute.xlu0 %1607
    %1611 = vset.pattern.permute.xlu0 0
    %1612 = vperm.xlu0 %1611, %v1542
    %v1613 = vpop.permute.xlu0 %1612
    %1616 = vset.pattern.permute.xlu0 0
    %1617 = vperm.xlu0 %1616, %v1543
    %v1618 = vpop.permute.xlu0 %1617
    %1621 = vset.pattern.permute.xlu0 0
    %1622 = vperm.xlu0 %1621, %v1544
    %v1623 = vpop.permute.xlu0 %1622
    %1626 = vset.pattern.permute.xlu0 0
    %1627 = vperm.xlu0 %1626, %v1545
    %v1628 = vpop.permute.xlu0 %1627
    %1631 = vset.pattern.permute.xlu0 0
    %1632 = vperm.xlu0 %1631, %v1546
    %v1633 = vpop.permute.xlu0 %1632
    %1636 = vset.pattern.permute.xlu0 0
    %1637 = vperm.xlu0 %1636, %v1547
    %v1638 = vpop.permute.xlu0 %1637
    %1641 = vset.pattern.permute.xlu0 0
    %1642 = vperm.xlu0 %1641, %v1548
    %v1643 = vpop.permute.xlu0 %1642
    %1646 = vset.pattern.permute.xlu0 0
    %1647 = vperm.xlu0 %1646, %v1549
    %v1648 = vpop.permute.xlu0 %1647
    %1651 = vset.pattern.permute.xlu0 0
    %1652 = vperm.xlu0 %1651, %v1550
    %v1653 = vpop.permute.xlu0 %1652
    %1656 = vset.pattern.permute.xlu0 0
    %1657 = vperm.xlu0 %1656, %v1551
    %v1658 = vpop.permute.xlu0 %1657
    %1661 = vset.pattern.permute.xlu0 0
    %1662 = vperm.xlu0 %1661, %v1552
    %v1663 = vpop.permute.xlu0 %1662
    %1666 = vset.pattern.permute.xlu0 0
    %1667 = vperm.xlu0 %1666, %v1553
    %v1668 = vpop.permute.xlu0 %1667
    %1671 = vset.pattern.permute.xlu0 0
    %1672 = vperm.xlu0 %1671, %v1554
    %v1673 = vpop.permute.xlu0 %1672
    %1676 = vset.pattern.permute.xlu0 0
    %1677 = vperm.xlu0 %1676, %v1555
    %v1678 = vpop.permute.xlu0 %1677
    %1681 = vset.pattern.permute.xlu0 0
    %1682 = vperm.xlu0 %1681, %v1556
    %v1683 = vpop.permute.xlu0 %1682
    %v1685 = vsub.f32 %v1476, %v1608
    %v1686 = vsub.f32 %v1477, %v1613
    %v1687 = vsub.f32 %v1478, %v1618
    %v1688 = vsub.f32 %v1479, %v1623
    %v1689 = vsub.f32 %v1480, %v1628
    %v1690 = vsub.f32 %v1481, %v1633
    %v1691 = vsub.f32 %v1482, %v1638
    %v1692 = vsub.f32 %v1483, %v1643
    %v1693 = vsub.f32 %v1484, %v1648
    %v1694 = vsub.f32 %v1485, %v1653
    %v1695 = vsub.f32 %v1486, %v1658
    %v1696 = vsub.f32 %v1487, %v1663
    %v1697 = vsub.f32 %v1488, %v1668
    %v1698 = vsub.f32 %v1489, %v1673
    %v1699 = vsub.f32 %v1490, %v1678
    %v1700 = vsub.f32 %v1491, %v1683
    %v1701 = vpack.c.bf16 %v1686, %v1685
    %v1702 = vpack.c.bf16 %v1688, %v1687
    %v1703 = vpack.c.bf16 %v1690, %v1689
    %v1704 = vpack.c.bf16 %v1692, %v1691
    %v1705 = vpack.c.bf16 %v1694, %v1693
    %v1706 = vpack.c.bf16 %v1696, %v1695
    %v1707 = vpack.c.bf16 %v1698, %v1697
    %v1708 = vpack.c.bf16 %v1700, %v1699
    %v1710 = vmul.bf16 %v1701, 1069105081
    %v1711 = vpow.bf16.pop %v1710
    %v1713 = vmul.bf16 %v1702, 1069105081
    %v1714 = vpow.bf16.pop %v1713
    %v1716 = vmul.bf16 %v1703, 1069105081
    %v1717 = vpow.bf16.pop %v1716
    %v1719 = vmul.bf16 %v1704, 1069105081
    %v1720 = vpow.bf16.pop %v1719
    %v1722 = vmul.bf16 %v1705, 1069105081
    %v1723 = vpow.bf16.pop %v1722
    %v1725 = vmul.bf16 %v1706, 1069105081
    %v1726 = vpow.bf16.pop %v1725
    %v1728 = vmul.bf16 %v1707, 1069105081
    %v1729 = vpow.bf16.pop %v1728
    %v1731 = vmul.bf16 %v1708, 1069105081
    %v1732 = vpow.bf16.pop %v1731
    %s1733 = scalar_lea.vmem [#allocation4], 128
    %v1734 = vld [vmem:[%s1733] sm:$0xff]
    %v1735 = vld [vmem:[%s1733 + $0x8] sm:$0xff]
    %v1736 = vld [vmem:[%s1733 + $0x10] sm:$0xff]
    %v1737 = vld [vmem:[%s1733 + $0x18] sm:$0xff]
    %v1738 = vld [vmem:[%s1733 + $0x20] sm:$0xff]
    %v1739 = vld [vmem:[%s1733 + $0x28] sm:$0xff]
    %v1740 = vld [vmem:[%s1733 + $0x30] sm:$0xff]
    %v1741 = vld [vmem:[%s1733 + $0x38] sm:$0xff]
    %v1742 = vld [vmem:[%s1733 + $0x40] sm:$0xff]
    %v1743 = vld [vmem:[%s1733 + $0x48] sm:$0xff]
    %v1744 = vld [vmem:[%s1733 + $0x50] sm:$0xff]
    %v1745 = vld [vmem:[%s1733 + $0x58] sm:$0xff]
    %v1746 = vld [vmem:[%s1733 + $0x60] sm:$0xff]
    %v1747 = vld [vmem:[%s1733 + $0x68] sm:$0xff]
    %v1748 = vld [vmem:[%s1733 + $0x70] sm:$0xff]
    %v1749 = vld [vmem:[%s1733 + $0x78] sm:$0xff]
    %v1750 = vmul.f32 %v1574, %v1734
    %v1751 = vmul.f32 %v1576, %v1735
    %v1752 = vmul.f32 %v1578, %v1736
    %v1753 = vmul.f32 %v1580, %v1737
    %v1754 = vmul.f32 %v1582, %v1738
    %v1755 = vmul.f32 %v1584, %v1739
    %v1756 = vmul.f32 %v1586, %v1740
    %v1757 = vmul.f32 %v1588, %v1741
    %v1758 = vmul.f32 %v1590, %v1742
    %v1759 = vmul.f32 %v1592, %v1743
    %v1760 = vmul.f32 %v1594, %v1744
    %v1761 = vmul.f32 %v1596, %v1745
    %v1762 = vmul.f32 %v1598, %v1746
    %v1763 = vmul.f32 %v1600, %v1747
    %v1764 = vmul.f32 %v1602, %v1748
    %v1765 = vmul.f32 %v1604, %v1749
    %v1766 = vunpack.c.l.bf16 %v1711
    %v1767 = vunpack.c.h.bf16 %v1711
    %v1768 = vunpack.c.l.bf16 %v1714
    %v1769 = vunpack.c.h.bf16 %v1714
    %v1770 = vunpack.c.l.bf16 %v1717
    %v1771 = vunpack.c.h.bf16 %v1717
    %v1772 = vunpack.c.l.bf16 %v1720
    %v1773 = vunpack.c.h.bf16 %v1720
    %v1774 = vunpack.c.l.bf16 %v1723
    %v1775 = vunpack.c.h.bf16 %v1723
    %v1776 = vunpack.c.l.bf16 %v1726
    %v1777 = vunpack.c.h.bf16 %v1726
    %v1778 = vunpack.c.l.bf16 %v1729
    %v1779 = vunpack.c.h.bf16 %v1729
    %v1780 = vunpack.c.l.bf16 %v1732
    %v1781 = vunpack.c.h.bf16 %v1732
    %1782 = vadd.xlane.f32.xlu0 %v1766
    %v1783 = vpop.xlane.xlu0 %1782
    %1784 = vadd.xlane.f32.xlu0 %v1767
    %v1785 = vpop.xlane.xlu0 %1784
    %1786 = vadd.xlane.f32.xlu0 %v1768
    %v1787 = vpop.xlane.xlu0 %1786
    %1788 = vadd.xlane.f32.xlu0 %v1769
    %v1789 = vpop.xlane.xlu0 %1788
    %1790 = vadd.xlane.f32.xlu0 %v1770
    %v1791 = vpop.xlane.xlu0 %1790
    %1792 = vadd.xlane.f32.xlu0 %v1771
    %v1793 = vpop.xlane.xlu0 %1792
    %1794 = vadd.xlane.f32.xlu0 %v1772
    %v1795 = vpop.xlane.xlu0 %1794
    %1796 = vadd.xlane.f32.xlu0 %v1773
    %v1797 = vpop.xlane.xlu0 %1796
    %1798 = vadd.xlane.f32.xlu0 %v1774
    %v1799 = vpop.xlane.xlu0 %1798
    %1800 = vadd.xlane.f32.xlu0 %v1775
    %v1801 = vpop.xlane.xlu0 %1800
    %1802 = vadd.xlane.f32.xlu0 %v1776
    %v1803 = vpop.xlane.xlu0 %1802
    %1804 = vadd.xlane.f32.xlu0 %v1777
    %v1805 = vpop.xlane.xlu0 %1804
    %1806 = vadd.xlane.f32.xlu0 %v1778
    %v1807 = vpop.xlane.xlu0 %1806
    %1808 = vadd.xlane.f32.xlu0 %v1779
    %v1809 = vpop.xlane.xlu0 %1808
    %1810 = vadd.xlane.f32.xlu0 %v1780
    %v1811 = vpop.xlane.xlu0 %1810
    %1812 = vadd.xlane.f32.xlu0 %v1781
    %v1813 = vpop.xlane.xlu0 %1812
    %v1814 = vadd.f32 %v1750, %v1783
    %v1815 = vadd.f32 %v1751, %v1785
    %v1816 = vadd.f32 %v1752, %v1787
    %v1817 = vadd.f32 %v1753, %v1789
    %v1818 = vadd.f32 %v1754, %v1791
    %v1819 = vadd.f32 %v1755, %v1793
    %v1820 = vadd.f32 %v1756, %v1795
    %v1821 = vadd.f32 %v1757, %v1797
    %v1822 = vadd.f32 %v1758, %v1799
    %v1823 = vadd.f32 %v1759, %v1801
    %v1824 = vadd.f32 %v1760, %v1803
    %v1825 = vadd.f32 %v1761, %v1805
    %v1826 = vadd.f32 %v1762, %v1807
    %v1827 = vadd.f32 %v1763, %v1809
    %v1828 = vadd.f32 %v1764, %v1811
    %v1829 = vadd.f32 %v1765, %v1813
    %1830 = vst.msk [vmem:[%s1733] sm:$0xff] %vm1302, %v1814
    %1831 = vst.msk [vmem:[%s1733 + $0x8] sm:$0xff] %vm1302, %v1815
    %1832 = vst.msk [vmem:[%s1733 + $0x10] sm:$0xff] %vm1302, %v1816
    %1833 = vst.msk [vmem:[%s1733 + $0x18] sm:$0xff] %vm1302, %v1817
    %1834 = vst.msk [vmem:[%s1733 + $0x20] sm:$0xff] %vm1302, %v1818
    %1835 = vst.msk [vmem:[%s1733 + $0x28] sm:$0xff] %vm1302, %v1819
    %1836 = vst.msk [vmem:[%s1733 + $0x30] sm:$0xff] %vm1302, %v1820
    %1837 = vst.msk [vmem:[%s1733 + $0x38] sm:$0xff] %vm1302, %v1821
    %1838 = vst.msk [vmem:[%s1733 + $0x40] sm:$0xff] %vm1302, %v1822
    %1839 = vst.msk [vmem:[%s1733 + $0x48] sm:$0xff] %vm1302, %v1823
    %1840 = vst.msk [vmem:[%s1733 + $0x50] sm:$0xff] %vm1302, %v1824
    %1841 = vst.msk [vmem:[%s1733 + $0x58] sm:$0xff] %vm1302, %v1825
    %1842 = vst.msk [vmem:[%s1733 + $0x60] sm:$0xff] %vm1302, %v1826
    %1843 = vst.msk [vmem:[%s1733 + $0x68] sm:$0xff] %vm1302, %v1827
    %1844 = vst.msk [vmem:[%s1733 + $0x70] sm:$0xff] %vm1302, %v1828
    %1845 = vst.msk [vmem:[%s1733 + $0x78] sm:$0xff] %vm1302, %v1829
    %1846 = vst.msk [vmem:[%s1492] sm:$0xff] %vm1302, %v1541
    %1847 = vst.msk [vmem:[%s1492 + $0x8] sm:$0xff] %vm1302, %v1542
    %1848 = vst.msk [vmem:[%s1492 + $0x10] sm:$0xff] %vm1302, %v1543
    %1849 = vst.msk [vmem:[%s1492 + $0x18] sm:$0xff] %vm1302, %v1544
    %1850 = vst.msk [vmem:[%s1492 + $0x20] sm:$0xff] %vm1302, %v1545
    %1851 = vst.msk [vmem:[%s1492 + $0x28] sm:$0xff] %vm1302, %v1546
    %1852 = vst.msk [vmem:[%s1492 + $0x30] sm:$0xff] %vm1302, %v1547
    %1853 = vst.msk [vmem:[%s1492 + $0x38] sm:$0xff] %vm1302, %v1548
    %1854 = vst.msk [vmem:[%s1492 + $0x40] sm:$0xff] %vm1302, %v1549
    %1855 = vst.msk [vmem:[%s1492 + $0x48] sm:$0xff] %vm1302, %v1550
    %1856 = vst.msk [vmem:[%s1492 + $0x50] sm:$0xff] %vm1302, %v1551
    %1857 = vst.msk [vmem:[%s1492 + $0x58] sm:$0xff] %vm1302, %v1552
    %1858 = vst.msk [vmem:[%s1492 + $0x60] sm:$0xff] %vm1302, %v1553
    %1859 = vst.msk [vmem:[%s1492 + $0x68] sm:$0xff] %vm1302, %v1554
    %1860 = vst.msk [vmem:[%s1492 + $0x70] sm:$0xff] %vm1302, %v1555
    %1861 = vst.msk [vmem:[%s1492 + $0x78] sm:$0xff] %vm1302, %v1556
    %1862 = vst [vmem:[#allocation6 + $0x40] sm:$0xff] %v1711
    %1863 = vst [vmem:[#allocation6 + $0x48] sm:$0xff] %v1714
    %1864 = vst [vmem:[#allocation6 + $0x50] sm:$0xff] %v1717
    %1865 = vst [vmem:[#allocation6 + $0x58] sm:$0xff] %v1720
    %1866 = vst [vmem:[#allocation6 + $0x60] sm:$0xff] %v1723
    %1867 = vst [vmem:[#allocation6 + $0x68] sm:$0xff] %v1726
    %1868 = vst [vmem:[#allocation6 + $0x70] sm:$0xff] %v1729
    %1869 = vst [vmem:[#allocation6 + $0x78] sm:$0xff] %v1732
    %v1870 = vld [vmem:[#allocation6] sm:$0xff]
    %v1871 = vld [vmem:[#allocation6 + $0x8] sm:$0xff]
    %v1872 = vld [vmem:[#allocation6 + $0x10] sm:$0xff]
    %v1873 = vld [vmem:[#allocation6 + $0x18] sm:$0xff]
    %v1874 = vld [vmem:[#allocation6 + $0x20] sm:$0xff]
    %v1875 = vld [vmem:[#allocation6 + $0x28] sm:$0xff]
    %v1876 = vld [vmem:[#allocation6 + $0x30] sm:$0xff]
    %v1877 = vld [vmem:[#allocation6 + $0x38] sm:$0xff]
    %v1878 = vld [vmem:[#allocation6 + $0x40] sm:$0xff]
    %v1879 = vld [vmem:[#allocation6 + $0x48] sm:$0xff]
    %v1880 = vld [vmem:[#allocation6 + $0x50] sm:$0xff]
    %v1881 = vld [vmem:[#allocation6 + $0x58] sm:$0xff]
    %v1882 = vld [vmem:[#allocation6 + $0x60] sm:$0xff]
    %v1883 = vld [vmem:[#allocation6 + $0x68] sm:$0xff]
    %v1884 = vld [vmem:[#allocation6 + $0x70] sm:$0xff]
    %v1885 = vld [vmem:[#allocation6 + $0x78] sm:$0xff]
    %1886 = vmatprep.subr.bf16.mxu0 0
    %1887 = vmatpush1.bf16.msra.mxu0 %v526
    %1888 = vmatprep.subr.bf16.mxu0 0
    %1889 = vmatpush1.bf16.msra.mxu0 %v527
    %1890 = vmatprep.subr.bf16.mxu0 0
    %1891 = vmatpush1.bf16.msra.mxu0 %v528
    %1892 = vmatprep.subr.bf16.mxu0 0
    %1893 = vmatpush1.bf16.msra.mxu0 %v529
    %1894 = vmatprep.subr.bf16.mxu0 0
    %1895 = vmatpush1.bf16.msra.mxu0 %v530
    %1896 = vmatprep.subr.bf16.mxu0 0
    %1897 = vmatpush1.bf16.msra.mxu0 %v531
    %1898 = vmatprep.subr.bf16.mxu0 0
    %1899 = vmatpush1.bf16.msra.mxu0 %v532
    %1900 = vmatprep.subr.bf16.mxu0 0
    %1901 = vmatpush1.bf16.msra.mxu0 %v533
    %1902 = vmatprep.subr.bf16.mxu0 0
    %1903 = vmatpush1.bf16.msra.mxu0 0
    %1904 = vmatprep.subr.bf16.mxu0 0
    %1905 = vmatpush1.bf16.msra.mxu0 0
    %1906 = vmatprep.subr.bf16.mxu0 0
    %1907 = vmatpush1.bf16.msra.mxu0 0
    %1908 = vmatprep.subr.bf16.mxu0 0
    %1909 = vmatpush1.bf16.msra.mxu0 0
    %1910 = vmatprep.subr.bf16.mxu0 0
    %1911 = vmatpush1.bf16.msra.mxu0 0
    %1912 = vmatprep.subr.bf16.mxu0 0
    %1913 = vmatpush1.bf16.msra.mxu0 0
    %1914 = vmatprep.subr.bf16.mxu0 0
    %1915 = vmatpush1.bf16.msra.mxu0 0
    %1916 = vmatprep.subr.bf16.mxu0 0
    %1917 = vmatpush1.bf16.msra.mxu0 0
    %1918 = vmatprep.mubr.bf16.mxu0 0
    %1919 = vmatmul.mubr.bf16.gmra.mrb[0].mxu0 %v1870
    %v1920 = vpop.f32.mrb[0].mxu0
    %v1921 = vadd.f32 0.0, %v1920
    %v1922 = vpop.f32.mrb[0].mxu0
    %v1923 = vpop.f32.mrb[0].mxu0
    %v1924 = vadd.f32 0.0, %v1923
    %v1925 = vpop.f32.mrb[0].mxu0
    %1926 = vmatprep.mubr.bf16.mxu0 0
    %1927 = vmatmul.mubr.bf16.gmra.mrb[0].mxu0 %v1871
    %v1928 = vpop.f32.mrb[0].mxu0
    %v1929 = vadd.f32 0.0, %v1928
    %v1930 = vpop.f32.mrb[0].mxu0
    %v1931 = vpop.f32.mrb[0].mxu0
    %v1932 = vadd.f32 0.0, %v1931
    %v1933 = vpop.f32.mrb[0].mxu0
    %1934 = vmatprep.mubr.bf16.mxu0 0
    %1935 = vmatmul.mubr.bf16.gmra.mrb[0].mxu0 %v1872
    %v1936 = vpop.f32.mrb[0].mxu0
    %v1937 = vadd.f32 0.0, %v1936
    %v1938 = vpop.f32.mrb[0].mxu0
    %v1939 = vpop.f32.mrb[0].mxu0
    %v1940 = vadd.f32 0.0, %v1939
    %v1941 = vpop.f32.mrb[0].mxu0
    %1942 = vmatprep.mubr.bf16.mxu0 0
    %1943 = vmatmul.mubr.bf16.gmra.mrb[0].mxu0 %v1873
    %v1944 = vpop.f32.mrb[0].mxu0
    %v1945 = vadd.f32 0.0, %v1944
    %v1946 = vpop.f32.mrb[0].mxu0
    %v1947 = vpop.f32.mrb[0].mxu0
    %v1948 = vadd.f32 0.0, %v1947
    %v1949 = vpop.f32.mrb[0].mxu0
    %1950 = vmatprep.mubr.bf16.mxu0 0
    %1951 = vmatmul.mubr.bf16.gmra.mrb[0].mxu0 %v1874
    %v1952 = vpop.f32.mrb[0].mxu0
    %v1953 = vadd.f32 0.0, %v1952
    %v1954 = vpop.f32.mrb[0].mxu0
    %v1955 = vpop.f32.mrb[0].mxu0
    %v1956 = vadd.f32 0.0, %v1955
    %v1957 = vpop.f32.mrb[0].mxu0
    %1958 = vmatprep.mubr.bf16.mxu0 0
    %1959 = vmatmul.mubr.bf16.gmra.mrb[0].mxu0 %v1875
    %v1960 = vpop.f32.mrb[0].mxu0
    %v1961 = vadd.f32 0.0, %v1960
    %v1962 = vpop.f32.mrb[0].mxu0
    %v1963 = vpop.f32.mrb[0].mxu0
    %v1964 = vadd.f32 0.0, %v1963
    %v1965 = vpop.f32.mrb[0].mxu0
    %1966 = vmatprep.mubr.bf16.mxu0 0
    %1967 = vmatmul.mubr.bf16.gmra.mrb[0].mxu0 %v1876
    %v1968 = vpop.f32.mrb[0].mxu0
    %v1969 = vadd.f32 0.0, %v1968
    %v1970 = vpop.f32.mrb[0].mxu0
    %v1971 = vpop.f32.mrb[0].mxu0
    %v1972 = vadd.f32 0.0, %v1971
    %v1973 = vpop.f32.mrb[0].mxu0
    %1974 = vmatprep.mubr.bf16.mxu0 0
    %1975 = vmatmul.mubr.bf16.gmra.mrb[0].mxu0 %v1877
    %v1976 = vpop.f32.mrb[0].mxu0
    %v1977 = vadd.f32 0.0, %v1976
    %v1978 = vpop.f32.mrb[0].mxu0
    %v1979 = vpop.f32.mrb[0].mxu0
    %v1980 = vadd.f32 0.0, %v1979
    %v1981 = vpop.f32.mrb[0].mxu0
    %1982 = vmatprep.mubr.bf16.mxu0 0
    %1983 = vmatmul.mubr.bf16.gmra.mrb[0].mxu0 %v1878
    %v1984 = vpop.f32.mrb[0].mxu0
    %v1985 = vadd.f32 0.0, %v1984
    %v1986 = vpop.f32.mrb[0].mxu0
    %v1987 = vpop.f32.mrb[0].mxu0
    %v1988 = vadd.f32 0.0, %v1987
    %v1989 = vpop.f32.mrb[0].mxu0
    %1990 = vmatprep.mubr.bf16.mxu0 0
    %1991 = vmatmul.mubr.bf16.gmra.mrb[0].mxu0 %v1879
    %v1992 = vpop.f32.mrb[0].mxu0
    %v1993 = vadd.f32 0.0, %v1992
    %v1994 = vpop.f32.mrb[0].mxu0
    %v1995 = vpop.f32.mrb[0].mxu0
    %v1996 = vadd.f32 0.0, %v1995
    %v1997 = vpop.f32.mrb[0].mxu0
    %1998 = vmatprep.mubr.bf16.mxu0 0
    %1999 = vmatmul.mubr.bf16.gmra.mrb[0].mxu0 %v1880
    %v2000 = vpop.f32.mrb[0].mxu0
    %v2001 = vadd.f32 0.0, %v2000
    %v2002 = vpop.f32.mrb[0].mxu0
    %v2003 = vpop.f32.mrb[0].mxu0
    %v2004 = vadd.f32 0.0, %v2003
    %v2005 = vpop.f32.mrb[0].mxu0
    %2006 = vmatprep.mubr.bf16.mxu0 0
    %2007 = vmatmul.mubr.bf16.gmra.mrb[0].mxu0 %v1881
    %v2008 = vpop.f32.mrb[0].mxu0
    %v2009 = vadd.f32 0.0, %v2008
    %v2010 = vpop.f32.mrb[0].mxu0
    %v2011 = vpop.f32.mrb[0].mxu0
    %v2012 = vadd.f32 0.0, %v2011
    %v2013 = vpop.f32.mrb[0].mxu0
    %2014 = vmatprep.mubr.bf16.mxu0 0
    %2015 = vmatmul.mubr.bf16.gmra.mrb[0].mxu0 %v1882
    %v2016 = vpop.f32.mrb[0].mxu0
    %v2017 = vadd.f32 0.0, %v2016
    %v2018 = vpop.f32.mrb[0].mxu0
    %v2019 = vpop.f32.mrb[0].mxu0
    %v2020 = vadd.f32 0.0, %v2019
    %v2021 = vpop.f32.mrb[0].mxu0
    %2022 = vmatprep.mubr.bf16.mxu0 0
    %2023 = vmatmul.mubr.bf16.gmra.mrb[0].mxu0 %v1883
    %v2024 = vpop.f32.mrb[0].mxu0
    %v2025 = vadd.f32 0.0, %v2024
    %v2026 = vpop.f32.mrb[0].mxu0
    %v2027 = vpop.f32.mrb[0].mxu0
    %v2028 = vadd.f32 0.0, %v2027
    %v2029 = vpop.f32.mrb[0].mxu0
    %2030 = vmatprep.mubr.bf16.mxu0 0
    %2031 = vmatmul.mubr.bf16.gmra.mrb[0].mxu0 %v1884
    %v2032 = vpop.f32.mrb[0].mxu0
    %v2033 = vadd.f32 0.0, %v2032
    %v2034 = vpop.f32.mrb[0].mxu0
    %v2035 = vpop.f32.mrb[0].mxu0
    %v2036 = vadd.f32 0.0, %v2035
    %v2037 = vpop.f32.mrb[0].mxu0
    %2038 = vmatprep.mubr.bf16.mxu0 0
    %2039 = vmatmul.mubr.bf16.gmra.mrb[0].mxu0 %v1885
    %v2040 = vpop.f32.mrb[0].mxu0
    %v2041 = vadd.f32 0.0, %v2040
    %v2042 = vpop.f32.mrb[0].mxu0
    %v2043 = vpop.f32.mrb[0].mxu0
    %v2044 = vadd.f32 0.0, %v2043
    %v2045 = vpop.f32.mrb[0].mxu0
    %2046 = vdwg.mxu0
    %v2047 = vld [vmem:[#allocation5] sm:$0xff]
    %v2048 = vld [vmem:[#allocation5 + $0x8] sm:$0xff]
    %v2049 = vld [vmem:[#allocation5 + $0x10] sm:$0xff]
    %v2050 = vld [vmem:[#allocation5 + $0x18] sm:$0xff]
    %v2051 = vld [vmem:[#allocation5 + $0x20] sm:$0xff]
    %v2052 = vld [vmem:[#allocation5 + $0x28] sm:$0xff]
    %v2053 = vld [vmem:[#allocation5 + $0x30] sm:$0xff]
    %v2054 = vld [vmem:[#allocation5 + $0x38] sm:$0xff]
    %v2055 = vld [vmem:[#allocation5 + $0x40] sm:$0xff]
    %v2056 = vld [vmem:[#allocation5 + $0x48] sm:$0xff]
    %v2057 = vld [vmem:[#allocation5 + $0x50] sm:$0xff]
    %v2058 = vld [vmem:[#allocation5 + $0x58] sm:$0xff]
    %v2059 = vld [vmem:[#allocation5 + $0x60] sm:$0xff]
    %v2060 = vld [vmem:[#allocation5 + $0x68] sm:$0xff]
    %v2061 = vld [vmem:[#allocation5 + $0x70] sm:$0xff]
    %v2062 = vld [vmem:[#allocation5 + $0x78] sm:$0xff]
    %2064 = vset.pattern.permute.xlu0 0
    %2065 = vperm.xlu0 %2064, %v1047
    %v2066 = vpop.permute.xlu0 %2065
    %2069 = vset.pattern.permute.xlu0 0
    %2070 = vperm.xlu0 %2069, %v1049
    %v2071 = vpop.permute.xlu0 %2070
    %2074 = vset.pattern.permute.xlu0 0
    %2075 = vperm.xlu0 %2074, %v1051
    %v2076 = vpop.permute.xlu0 %2075
    %2079 = vset.pattern.permute.xlu0 0
    %2080 = vperm.xlu0 %2079, %v1053
    %v2081 = vpop.permute.xlu0 %2080
    %2084 = vset.pattern.permute.xlu0 0
    %2085 = vperm.xlu0 %2084, %v1055
    %v2086 = vpop.permute.xlu0 %2085
    %2089 = vset.pattern.permute.xlu0 0
    %2090 = vperm.xlu0 %2089, %v1057
    %v2091 = vpop.permute.xlu0 %2090
    %2094 = vset.pattern.permute.xlu0 0
    %2095 = vperm.xlu0 %2094, %v1059
    %v2096 = vpop.permute.xlu0 %2095
    %2099 = vset.pattern.permute.xlu0 0
    %2100 = vperm.xlu0 %2099, %v1061
    %v2101 = vpop.permute.xlu0 %2100
    %2104 = vset.pattern.permute.xlu0 0
    %2105 = vperm.xlu0 %2104, %v1063
    %v2106 = vpop.permute.xlu0 %2105
    %2109 = vset.pattern.permute.xlu0 0
    %2110 = vperm.xlu0 %2109, %v1065
    %v2111 = vpop.permute.xlu0 %2110
    %2114 = vset.pattern.permute.xlu0 0
    %2115 = vperm.xlu0 %2114, %v1067
    %v2116 = vpop.permute.xlu0 %2115
    %2119 = vset.pattern.permute.xlu0 0
    %2120 = vperm.xlu0 %2119, %v1069
    %v2121 = vpop.permute.xlu0 %2120
    %2124 = vset.pattern.permute.xlu0 0
    %2125 = vperm.xlu0 %2124, %v1071
    %v2126 = vpop.permute.xlu0 %2125
    %2129 = vset.pattern.permute.xlu0 0
    %2130 = vperm.xlu0 %2129, %v1073
    %v2131 = vpop.permute.xlu0 %2130
    %2134 = vset.pattern.permute.xlu0 0
    %2135 = vperm.xlu0 %2134, %v1075
    %v2136 = vpop.permute.xlu0 %2135
    %2139 = vset.pattern.permute.xlu0 0
    %2140 = vperm.xlu0 %2139, %v1077
    %v2141 = vpop.permute.xlu0 %2140
    %v2143 = vmul.f32 %v2066, %v2047
    %v2144 = vmul.f32 %v2071, %v2048
    %v2145 = vmul.f32 %v2076, %v2049
    %v2146 = vmul.f32 %v2081, %v2050
    %v2147 = vmul.f32 %v2086, %v2051
    %v2148 = vmul.f32 %v2091, %v2052
    %v2149 = vmul.f32 %v2096, %v2053
    %v2150 = vmul.f32 %v2101, %v2054
    %v2151 = vmul.f32 %v2106, %v2055
    %v2152 = vmul.f32 %v2111, %v2056
    %v2153 = vmul.f32 %v2116, %v2057
    %v2154 = vmul.f32 %v2121, %v2058
    %v2155 = vmul.f32 %v2126, %v2059
    %v2156 = vmul.f32 %v2131, %v2060
    %v2157 = vmul.f32 %v2136, %v2061
    %v2158 = vmul.f32 %v2141, %v2062
    %v2159 = vadd.f32 %v2143, %v1921
    %v2160 = vadd.f32 %v2144, %v1924
    %v2161 = vadd.f32 %v2145, %v1929
    %v2162 = vadd.f32 %v2146, %v1932
    %v2163 = vadd.f32 %v2147, %v1937
    %v2164 = vadd.f32 %v2148, %v1940
    %v2165 = vadd.f32 %v2149, %v1945
    %v2166 = vadd.f32 %v2150, %v1948
    %v2167 = vadd.f32 %v2151, %v1953
    %v2168 = vadd.f32 %v2152, %v1956
    %v2169 = vadd.f32 %v2153, %v1961
    %v2170 = vadd.f32 %v2154, %v1964
    %v2171 = vadd.f32 %v2155, %v1969
    %v2172 = vadd.f32 %v2156, %v1972
    %v2173 = vadd.f32 %v2157, %v1977
    %v2174 = vadd.f32 %v2158, %v1980
    %2175 = vst [vmem:[#allocation5] sm:$0xff] %v2159
    %2176 = vst [vmem:[#allocation5 + $0x8] sm:$0xff] %v2160
    %2177 = vst [vmem:[#allocation5 + $0x10] sm:$0xff] %v2161
    %2178 = vst [vmem:[#allocation5 + $0x18] sm:$0xff] %v2162
    %2179 = vst [vmem:[#allocation5 + $0x20] sm:$0xff] %v2163
    %2180 = vst [vmem:[#allocation5 + $0x28] sm:$0xff] %v2164
    %2181 = vst [vmem:[#allocation5 + $0x30] sm:$0xff] %v2165
    %2182 = vst [vmem:[#allocation5 + $0x38] sm:$0xff] %v2166
    %2183 = vst [vmem:[#allocation5 + $0x40] sm:$0xff] %v2167
    %2184 = vst [vmem:[#allocation5 + $0x48] sm:$0xff] %v2168
    %2185 = vst [vmem:[#allocation5 + $0x50] sm:$0xff] %v2169
    %2186 = vst [vmem:[#allocation5 + $0x58] sm:$0xff] %v2170
    %2187 = vst [vmem:[#allocation5 + $0x60] sm:$0xff] %v2171
    %2188 = vst [vmem:[#allocation5 + $0x68] sm:$0xff] %v2172
    %2189 = vst [vmem:[#allocation5 + $0x70] sm:$0xff] %v2173
    %2190 = vst [vmem:[#allocation5 + $0x78] sm:$0xff] %v2174
    %s2191 = scalar_lea.vmem [#allocation5], 128
    %v2192 = vld [vmem:[%s2191] sm:$0xff]
    %v2193 = vld [vmem:[%s2191 + $0x8] sm:$0xff]
    %v2194 = vld [vmem:[%s2191 + $0x10] sm:$0xff]
    %v2195 = vld [vmem:[%s2191 + $0x18] sm:$0xff]
    %v2196 = vld [vmem:[%s2191 + $0x20] sm:$0xff]
    %v2197 = vld [vmem:[%s2191 + $0x28] sm:$0xff]
    %v2198 = vld [vmem:[%s2191 + $0x30] sm:$0xff]
    %v2199 = vld [vmem:[%s2191 + $0x38] sm:$0xff]
    %v2200 = vld [vmem:[%s2191 + $0x40] sm:$0xff]
    %v2201 = vld [vmem:[%s2191 + $0x48] sm:$0xff]
    %v2202 = vld [vmem:[%s2191 + $0x50] sm:$0xff]
    %v2203 = vld [vmem:[%s2191 + $0x58] sm:$0xff]
    %v2204 = vld [vmem:[%s2191 + $0x60] sm:$0xff]
    %v2205 = vld [vmem:[%s2191 + $0x68] sm:$0xff]
    %v2206 = vld [vmem:[%s2191 + $0x70] sm:$0xff]
    %v2207 = vld [vmem:[%s2191 + $0x78] sm:$0xff]
    %2209 = vset.pattern.permute.xlu0 0
    %2210 = vperm.xlu0 %2209, %v1574
    %v2211 = vpop.permute.xlu0 %2210
    %2214 = vset.pattern.permute.xlu0 0
    %2215 = vperm.xlu0 %2214, %v1576
    %v2216 = vpop.permute.xlu0 %2215
    %2219 = vset.pattern.permute.xlu0 0
    %2220 = vperm.xlu0 %2219, %v1578
    %v2221 = vpop.permute.xlu0 %2220
    %2224 = vset.pattern.permute.xlu0 0
    %2225 = vperm.xlu0 %2224, %v1580
    %v2226 = vpop.permute.xlu0 %2225
    %2229 = vset.pattern.permute.xlu0 0
    %2230 = vperm.xlu0 %2229, %v1582
    %v2231 = vpop.permute.xlu0 %2230
    %2234 = vset.pattern.permute.xlu0 0
    %2235 = vperm.xlu0 %2234, %v1584
    %v2236 = vpop.permute.xlu0 %2235
    %2239 = vset.pattern.permute.xlu0 0
    %2240 = vperm.xlu0 %2239, %v1586
    %v2241 = vpop.permute.xlu0 %2240
    %2244 = vset.pattern.permute.xlu0 0
    %2245 = vperm.xlu0 %2244, %v1588
    %v2246 = vpop.permute.xlu0 %2245
    %2249 = vset.pattern.permute.xlu0 0
    %2250 = vperm.xlu0 %2249, %v1590
    %v2251 = vpop.permute.xlu0 %2250
    %2254 = vset.pattern.permute.xlu0 0
    %2255 = vperm.xlu0 %2254, %v1592
    %v2256 = vpop.permute.xlu0 %2255
    %2259 = vset.pattern.permute.xlu0 0
    %2260 = vperm.xlu0 %2259, %v1594
    %v2261 = vpop.permute.xlu0 %2260
    %2264 = vset.pattern.permute.xlu0 0
    %2265 = vperm.xlu0 %2264, %v1596
    %v2266 = vpop.permute.xlu0 %2265
    %2269 = vset.pattern.permute.xlu0 0
    %2270 = vperm.xlu0 %2269, %v1598
    %v2271 = vpop.permute.xlu0 %2270
    %2274 = vset.pattern.permute.xlu0 0
    %2275 = vperm.xlu0 %2274, %v1600
    %v2276 = vpop.permute.xlu0 %2275
    %2279 = vset.pattern.permute.xlu0 0
    %2280 = vperm.xlu0 %2279, %v1602
    %v2281 = vpop.permute.xlu0 %2280
    %2284 = vset.pattern.permute.xlu0 0
    %2285 = vperm.xlu0 %2284, %v1604
    %v2286 = vpop.permute.xlu0 %2285
    %v2288 = vmul.f32 %v2211, %v2192
    %v2289 = vmul.f32 %v2216, %v2193
    %v2290 = vmul.f32 %v2221, %v2194
    %v2291 = vmul.f32 %v2226, %v2195
    %v2292 = vmul.f32 %v2231, %v2196
    %v2293 = vmul.f32 %v2236, %v2197
    %v2294 = vmul.f32 %v2241, %v2198
    %v2295 = vmul.f32 %v2246, %v2199
    %v2296 = vmul.f32 %v2251, %v2200
    %v2297 = vmul.f32 %v2256, %v2201
    %v2298 = vmul.f32 %v2261, %v2202
    %v2299 = vmul.f32 %v2266, %v2203
    %v2300 = vmul.f32 %v2271, %v2204
    %v2301 = vmul.f32 %v2276, %v2205
    %v2302 = vmul.f32 %v2281, %v2206
    %v2303 = vmul.f32 %v2286, %v2207
    %v2304 = vadd.f32 %v2288, %v1985
    %v2305 = vadd.f32 %v2289, %v1988
    %v2306 = vadd.f32 %v2290, %v1993
    %v2307 = vadd.f32 %v2291, %v1996
    %v2308 = vadd.f32 %v2292, %v2001
    %v2309 = vadd.f32 %v2293, %v2004
    %v2310 = vadd.f32 %v2294, %v2009
    %v2311 = vadd.f32 %v2295, %v2012
    %v2312 = vadd.f32 %v2296, %v2017
    %v2313 = vadd.f32 %v2297, %v2020
    %v2314 = vadd.f32 %v2298, %v2025
    %v2315 = vadd.f32 %v2299, %v2028
    %v2316 = vadd.f32 %v2300, %v2033
    %v2317 = vadd.f32 %v2301, %v2036
    %v2318 = vadd.f32 %v2302, %v2041
    %v2319 = vadd.f32 %v2303, %v2044
    %2320 = vst [vmem:[%s2191] sm:$0xff] %v2304
    %2321 = vst [vmem:[%s2191 + $0x8] sm:$0xff] %v2305
    %2322 = vst [vmem:[%s2191 + $0x10] sm:$0xff] %v2306
    %2323 = vst [vmem:[%s2191 + $0x18] sm:$0xff] %v2307
    %2324 = vst [vmem:[%s2191 + $0x20] sm:$0xff] %v2308
    %2325 = vst [vmem:[%s2191 + $0x28] sm:$0xff] %v2309
    %2326 = vst [vmem:[%s2191 + $0x30] sm:$0xff] %v2310
    %2327 = vst [vmem:[%s2191 + $0x38] sm:$0xff] %v2311
    %2328 = vst [vmem:[%s2191 + $0x40] sm:$0xff] %v2312
    %2329 = vst [vmem:[%s2191 + $0x48] sm:$0xff] %v2313
    %2330 = vst [vmem:[%s2191 + $0x50] sm:$0xff] %v2314
    %2331 = vst [vmem:[%s2191 + $0x58] sm:$0xff] %v2315
    %2332 = vst [vmem:[%s2191 + $0x60] sm:$0xff] %v2316
    %2333 = vst [vmem:[%s2191 + $0x68] sm:$0xff] %v2317
    %2334 = vst [vmem:[%s2191 + $0x70] sm:$0xff] %v2318
    %2335 = vst [vmem:[%s2191 + $0x78] sm:$0xff] %v2319
    // Predicated region
    $region30: #{tpu_custom_call.1} parent=1 // pred_check
      %p2336 = pneg %p25
    $region31: #{tpu_custom_call.1} parent=1 // pred_check_branch
      %2338 = sbr.rel (%p2336) target = $region33
    $region32: #{tpu_custom_call.1} parent=1 // pred_region
      %v2339 = vld [vmem:[#allocation5] sm:$0xff]
      %v2340 = vld [vmem:[#allocation5 + $0x8] sm:$0xff]
      %v2341 = vld [vmem:[#allocation5 + $0x10] sm:$0xff]
      %v2342 = vld [vmem:[#allocation5 + $0x18] sm:$0xff]
      %v2343 = vld [vmem:[#allocation5 + $0x20] sm:$0xff]
      %v2344 = vld [vmem:[#allocation5 + $0x28] sm:$0xff]
      %v2345 = vld [vmem:[#allocation5 + $0x30] sm:$0xff]
      %v2346 = vld [vmem:[#allocation5 + $0x38] sm:$0xff]
      %v2347 = vld [vmem:[#allocation5 + $0x40] sm:$0xff]
      %v2348 = vld [vmem:[#allocation5 + $0x48] sm:$0xff]
      %v2349 = vld [vmem:[#allocation5 + $0x50] sm:$0xff]
      %v2350 = vld [vmem:[#allocation5 + $0x58] sm:$0xff]
      %v2351 = vld [vmem:[#allocation5 + $0x60] sm:$0xff]
      %v2352 = vld [vmem:[#allocation5 + $0x68] sm:$0xff]
      %v2353 = vld [vmem:[#allocation5 + $0x70] sm:$0xff]
      %v2354 = vld [vmem:[#allocation5 + $0x78] sm:$0xff]
      %v2355 = vld [vmem:[#allocation4] sm:$0xff]
      %v2356 = vld [vmem:[#allocation4 + $0x8] sm:$0xff]
      %v2357 = vld [vmem:[#allocation4 + $0x10] sm:$0xff]
      %v2358 = vld [vmem:[#allocation4 + $0x18] sm:$0xff]
      %v2359 = vld [vmem:[#allocation4 + $0x20] sm:$0xff]
      %v2360 = vld [vmem:[#allocation4 + $0x28] sm:$0xff]
      %v2361 = vld [vmem:[#allocation4 + $0x30] sm:$0xff]
      %v2362 = vld [vmem:[#allocation4 + $0x38] sm:$0xff]
      %v2363 = vld [vmem:[#allocation4 + $0x40] sm:$0xff]
      %v2364 = vld [vmem:[#allocation4 + $0x48] sm:$0xff]
      %v2365 = vld [vmem:[#allocation4 + $0x50] sm:$0xff]
      %v2366 = vld [vmem:[#allocation4 + $0x58] sm:$0xff]
      %v2367 = vld [vmem:[#allocation4 + $0x60] sm:$0xff]
      %v2368 = vld [vmem:[#allocation4 + $0x68] sm:$0xff]
      %v2369 = vld [vmem:[#allocation4 + $0x70] sm:$0xff]
      %v2370 = vld [vmem:[#allocation4 + $0x78] sm:$0xff]
      %v2371 = vrcp.pop %v2355
      %v2372 = vrcp.pop %v2356
      %v2373 = vrcp.pop %v2357
      %v2374 = vrcp.pop %v2358
      %v2375 = vrcp.pop %v2359
      %v2376 = vrcp.pop %v2360
      %v2377 = vrcp.pop %v2361
      %v2378 = vrcp.pop %v2362
      %v2379 = vrcp.pop %v2363
      %v2380 = vrcp.pop %v2364
      %v2381 = vrcp.pop %v2365
      %v2382 = vrcp.pop %v2366
      %v2383 = vrcp.pop %v2367
      %v2384 = vrcp.pop %v2368
      %v2385 = vrcp.pop %v2369
      %v2386 = vrcp.pop %v2370
      %2388 = vset.pattern.permute.xlu0 0
      %2389 = vperm.xlu0 %2388, %v2371
      %v2390 = vpop.permute.xlu0 %2389
      %2393 = vset.pattern.permute.xlu0 0
      %2394 = vperm.xlu0 %2393, %v2372
      %v2395 = vpop.permute.xlu0 %2394
      %2398 = vset.pattern.permute.xlu0 0
      %2399 = vperm.xlu0 %2398, %v2373
      %v2400 = vpop.permute.xlu0 %2399
      %2403 = vset.pattern.permute.xlu0 0
      %2404 = vperm.xlu0 %2403, %v2374
      %v2405 = vpop.permute.xlu0 %2404
      %2408 = vset.pattern.permute.xlu0 0
      %2409 = vperm.xlu0 %2408, %v2375
      %v2410 = vpop.permute.xlu0 %2409
      %2413 = vset.pattern.permute.xlu0 0
      %2414 = vperm.xlu0 %2413, %v2376
      %v2415 = vpop.permute.xlu0 %2414
      %2418 = vset.pattern.permute.xlu0 0
      %2419 = vperm.xlu0 %2418, %v2377
      %v2420 = vpop.permute.xlu0 %2419
      %2423 = vset.pattern.permute.xlu0 0
      %2424 = vperm.xlu0 %2423, %v2378
      %v2425 = vpop.permute.xlu0 %2424
      %2428 = vset.pattern.permute.xlu0 0
      %2429 = vperm.xlu0 %2428, %v2379
      %v2430 = vpop.permute.xlu0 %2429
      %2433 = vset.pattern.permute.xlu0 0
      %2434 = vperm.xlu0 %2433, %v2380
      %v2435 = vpop.permute.xlu0 %2434
      %2438 = vset.pattern.permute.xlu0 0
      %2439 = vperm.xlu0 %2438, %v2381
      %v2440 = vpop.permute.xlu0 %2439
      %2443 = vset.pattern.permute.xlu0 0
      %2444 = vperm.xlu0 %2443, %v2382
      %v2445 = vpop.permute.xlu0 %2444
      %2448 = vset.pattern.permute.xlu0 0
      %2449 = vperm.xlu0 %2448, %v2383
      %v2450 = vpop.permute.xlu0 %2449
      %2453 = vset.pattern.permute.xlu0 0
      %2454 = vperm.xlu0 %2453, %v2384
      %v2455 = vpop.permute.xlu0 %2454
      %2458 = vset.pattern.permute.xlu0 0
      %2459 = vperm.xlu0 %2458, %v2385
      %v2460 = vpop.permute.xlu0 %2459
      %2463 = vset.pattern.permute.xlu0 0
      %2464 = vperm.xlu0 %2463, %v2386
      %v2465 = vpop.permute.xlu0 %2464
      %v2467 = vmul.f32 %v2339, %v2390
      %v2468 = vmul.f32 %v2340, %v2395
      %v2469 = vmul.f32 %v2341, %v2400
      %v2470 = vmul.f32 %v2342, %v2405
      %v2471 = vmul.f32 %v2343, %v2410
      %v2472 = vmul.f32 %v2344, %v2415
      %v2473 = vmul.f32 %v2345, %v2420
      %v2474 = vmul.f32 %v2346, %v2425
      %v2475 = vmul.f32 %v2347, %v2430
      %v2476 = vmul.f32 %v2348, %v2435
      %v2477 = vmul.f32 %v2349, %v2440
      %v2478 = vmul.f32 %v2350, %v2445
      %v2479 = vmul.f32 %v2351, %v2450
      %v2480 = vmul.f32 %v2352, %v2455
      %v2481 = vmul.f32 %v2353, %v2460
      %v2482 = vmul.f32 %v2354, %v2465
      %v2483 = vadd.f32 %v2467, 0.0
      %v2484 = vadd.f32 %v2468, 0.0
      %v2485 = vadd.f32 %v2469, 0.0
      %v2486 = vadd.f32 %v2470, 0.0
      %v2487 = vadd.f32 %v2471, 0.0
      %v2488 = vadd.f32 %v2472, 0.0
      %v2489 = vadd.f32 %v2473, 0.0
      %v2490 = vadd.f32 %v2474, 0.0
      %v2491 = vadd.f32 %v2475, 0.0
      %v2492 = vadd.f32 %v2476, 0.0
      %v2493 = vadd.f32 %v2477, 0.0
      %v2494 = vadd.f32 %v2478, 0.0
      %v2495 = vadd.f32 %v2479, 0.0
      %v2496 = vadd.f32 %v2480, 0.0
      %v2497 = vadd.f32 %v2481, 0.0
      %v2498 = vadd.f32 %v2482, 0.0
      %v2499 = vld [vmem:[%s2191] sm:$0xff]
      %v2500 = vld [vmem:[%s2191 + $0x8] sm:$0xff]
      %v2501 = vld [vmem:[%s2191 + $0x10] sm:$0xff]
      %v2502 = vld [vmem:[%s2191 + $0x18] sm:$0xff]
      %v2503 = vld [vmem:[%s2191 + $0x20] sm:$0xff]
      %v2504 = vld [vmem:[%s2191 + $0x28] sm:$0xff]
      %v2505 = vld [vmem:[%s2191 + $0x30] sm:$0xff]
      %v2506 = vld [vmem:[%s2191 + $0x38] sm:$0xff]
      %v2507 = vld [vmem:[%s2191 + $0x40] sm:$0xff]
      %v2508 = vld [vmem:[%s2191 + $0x48] sm:$0xff]
      %v2509 = vld [vmem:[%s2191 + $0x50] sm:$0xff]
      %v2510 = vld [vmem:[%s2191 + $0x58] sm:$0xff]
      %v2511 = vld [vmem:[%s2191 + $0x60] sm:$0xff]
      %v2512 = vld [vmem:[%s2191 + $0x68] sm:$0xff]
      %v2513 = vld [vmem:[%s2191 + $0x70] sm:$0xff]
      %v2514 = vld [vmem:[%s2191 + $0x78] sm:$0xff]
      %v2515 = vld [vmem:[%s1733] sm:$0xff]
      %v2516 = vld [vmem:[%s1733 + $0x8] sm:$0xff]
      %v2517 = vld [vmem:[%s1733 + $0x10] sm:$0xff]
      %v2518 = vld [vmem:[%s1733 + $0x18] sm:$0xff]
      %v2519 = vld [vmem:[%s1733 + $0x20] sm:$0xff]
      %v2520 = vld [vmem:[%s1733 + $0x28] sm:$0xff]
      %v2521 = vld [vmem:[%s1733 + $0x30] sm:$0xff]
      %v2522 = vld [vmem:[%s1733 + $0x38] sm:$0xff]
      %v2523 = vld [vmem:[%s1733 + $0x40] sm:$0xff]
      %v2524 = vld [vmem:[%s1733 + $0x48] sm:$0xff]
      %v2525 = vld [vmem:[%s1733 + $0x50] sm:$0xff]
      %v2526 = vld [vmem:[%s1733 + $0x58] sm:$0xff]
      %v2527 = vld [vmem:[%s1733 + $0x60] sm:$0xff]
      %v2528 = vld [vmem:[%s1733 + $0x68] sm:$0xff]
      %v2529 = vld [vmem:[%s1733 + $0x70] sm:$0xff]
      %v2530 = vld [vmem:[%s1733 + $0x78] sm:$0xff]
      %v2531 = vrcp.pop %v2515
      %v2532 = vrcp.pop %v2516
      %v2533 = vrcp.pop %v2517
      %v2534 = vrcp.pop %v2518
      %v2535 = vrcp.pop %v2519
      %v2536 = vrcp.pop %v2520
      %v2537 = vrcp.pop %v2521
      %v2538 = vrcp.pop %v2522
      %v2539 = vrcp.pop %v2523
      %v2540 = vrcp.pop %v2524
      %v2541 = vrcp.pop %v2525
      %v2542 = vrcp.pop %v2526
      %v2543 = vrcp.pop %v2527
      %v2544 = vrcp.pop %v2528
      %v2545 = vrcp.pop %v2529
      %v2546 = vrcp.pop %v2530
      %2548 = vset.pattern.permute.xlu0 0
      %2549 = vperm.xlu0 %2548, %v2531
      %v2550 = vpop.permute.xlu0 %2549
      %2553 = vset.pattern.permute.xlu0 0
      %2554 = vperm.xlu0 %2553, %v2532
      %v2555 = vpop.permute.xlu0 %2554
      %2558 = vset.pattern.permute.xlu0 0
      %2559 = vperm.xlu0 %2558, %v2533
      %v2560 = vpop.permute.xlu0 %2559
      %2563 = vset.pattern.permute.xlu0 0
      %2564 = vperm.xlu0 %2563, %v2534
      %v2565 = vpop.permute.xlu0 %2564
      %2568 = vset.pattern.permute.xlu0 0
      %2569 = vperm.xlu0 %2568, %v2535
      %v2570 = vpop.permute.xlu0 %2569
      %2573 = vset.pattern.permute.xlu0 0
      %2574 = vperm.xlu0 %2573, %v2536
      %v2575 = vpop.permute.xlu0 %2574
      %2578 = vset.pattern.permute.xlu0 0
      %2579 = vperm.xlu0 %2578, %v2537
      %v2580 = vpop.permute.xlu0 %2579
      %2583 = vset.pattern.permute.xlu0 0
      %2584 = vperm.xlu0 %2583, %v2538
      %v2585 = vpop.permute.xlu0 %2584
      %2588 = vset.pattern.permute.xlu0 0
      %2589 = vperm.xlu0 %2588, %v2539
      %v2590 = vpop.permute.xlu0 %2589
      %2593 = vset.pattern.permute.xlu0 0
      %2594 = vperm.xlu0 %2593, %v2540
      %v2595 = vpop.permute.xlu0 %2594
      %2598 = vset.pattern.permute.xlu0 0
      %2599 = vperm.xlu0 %2598, %v2541
      %v2600 = vpop.permute.xlu0 %2599
      %2603 = vset.pattern.permute.xlu0 0
      %2604 = vperm.xlu0 %2603, %v2542
      %v2605 = vpop.permute.xlu0 %2604
      %2608 = vset.pattern.permute.xlu0 0
      %2609 = vperm.xlu0 %2608, %v2543
      %v2610 = vpop.permute.xlu0 %2609
      %2613 = vset.pattern.permute.xlu0 0
      %2614 = vperm.xlu0 %2613, %v2544
      %v2615 = vpop.permute.xlu0 %2614
      %2618 = vset.pattern.permute.xlu0 0
      %2619 = vperm.xlu0 %2618, %v2545
      %v2620 = vpop.permute.xlu0 %2619
      %2623 = vset.pattern.permute.xlu0 0
      %2624 = vperm.xlu0 %2623, %v2546
      %v2625 = vpop.permute.xlu0 %2624
      %v2627 = vmul.f32 %v2499, %v2550
      %v2628 = vmul.f32 %v2500, %v2555
      %v2629 = vmul.f32 %v2501, %v2560
      %v2630 = vmul.f32 %v2502, %v2565
      %v2631 = vmul.f32 %v2503, %v2570
      %v2632 = vmul.f32 %v2504, %v2575
      %v2633 = vmul.f32 %v2505, %v2580
      %v2634 = vmul.f32 %v2506, %v2585
      %v2635 = vmul.f32 %v2507, %v2590
      %v2636 = vmul.f32 %v2508, %v2595
      %v2637 = vmul.f32 %v2509, %v2600
      %v2638 = vmul.f32 %v2510, %v2605
      %v2639 = vmul.f32 %v2511, %v2610
      %v2640 = vmul.f32 %v2512, %v2615
      %v2641 = vmul.f32 %v2513, %v2620
      %v2642 = vmul.f32 %v2514, %v2625
      %v2643 = vadd.f32 %v2483, %v2627
      %v2644 = vadd.f32 %v2484, %v2628
      %v2645 = vadd.f32 %v2485, %v2629
      %v2646 = vadd.f32 %v2486, %v2630
      %v2647 = vadd.f32 %v2487, %v2631
      %v2648 = vadd.f32 %v2488, %v2632
      %v2649 = vadd.f32 %v2489, %v2633
      %v2650 = vadd.f32 %v2490, %v2634
      %v2651 = vadd.f32 %v2491, %v2635
      %v2652 = vadd.f32 %v2492, %v2636
      %v2653 = vadd.f32 %v2493, %v2637
      %v2654 = vadd.f32 %v2494, %v2638
      %v2655 = vadd.f32 %v2495, %v2639
      %v2656 = vadd.f32 %v2496, %v2640
      %v2657 = vadd.f32 %v2497, %v2641
      %v2658 = vadd.f32 %v2498, %v2642
      %v2659 = vmul.f32 %v2643, 0.5
      %v2660 = vmul.f32 %v2644, 0.5
      %v2661 = vmul.f32 %v2645, 0.5
      %v2662 = vmul.f32 %v2646, 0.5
      %v2663 = vmul.f32 %v2647, 0.5
      %v2664 = vmul.f32 %v2648, 0.5
      %v2665 = vmul.f32 %v2649, 0.5
      %v2666 = vmul.f32 %v2650, 0.5
      %v2667 = vmul.f32 %v2651, 0.5
      %v2668 = vmul.f32 %v2652, 0.5
      %v2669 = vmul.f32 %v2653, 0.5
      %v2670 = vmul.f32 %v2654, 0.5
      %v2671 = vmul.f32 %v2655, 0.5
      %v2672 = vmul.f32 %v2656, 0.5
      %v2673 = vmul.f32 %v2657, 0.5
      %v2674 = vmul.f32 %v2658, 0.5
      %2675 = vst [vmem:[#allocation7] sm:$0xff] %v2659
      %2676 = vst [vmem:[#allocation7 + $0x8] sm:$0xff] %v2660
      %2677 = vst [vmem:[#allocation7 + $0x10] sm:$0xff] %v2661
      %2678 = vst [vmem:[#allocation7 + $0x18] sm:$0xff] %v2662
      %2679 = vst [vmem:[#allocation7 + $0x20] sm:$0xff] %v2663
      %2680 = vst [vmem:[#allocation7 + $0x28] sm:$0xff] %v2664
      %2681 = vst [vmem:[#allocation7 + $0x30] sm:$0xff] %v2665
      %2682 = vst [vmem:[#allocation7 + $0x38] sm:$0xff] %v2666
      %2683 = vst [vmem:[#allocation7 + $0x40] sm:$0xff] %v2667
      %2684 = vst [vmem:[#allocation7 + $0x48] sm:$0xff] %v2668
      %2685 = vst [vmem:[#allocation7 + $0x50] sm:$0xff] %v2669
      %2686 = vst [vmem:[#allocation7 + $0x58] sm:$0xff] %v2670
      %2687 = vst [vmem:[#allocation7 + $0x60] sm:$0xff] %v2671
      %2688 = vst [vmem:[#allocation7 + $0x68] sm:$0xff] %v2672
      %2689 = vst [vmem:[#allocation7 + $0x70] sm:$0xff] %v2673
      %2690 = vst [vmem:[#allocation7 + $0x78] sm:$0xff] %v2674
    $region33: #{tpu_custom_call.1} parent=1 // pred_fallthru
      _
    // Predicated region
    $region34: #{tpu_custom_call.1} parent=1 // pred_check
      _
    $region35: #{tpu_custom_call.1} parent=1 // pred_check_branch
      %2692 = sbr.rel (0) target = $region37
    $region36: #{tpu_custom_call.1} parent=1 // pred_region
      %s2694 = ssub.s32 2048, 2048
      %2695 = vsyncadd [#allocation8], %s2694
      %s2696 = sshll.u32 [#allocation7], 4
      %s2697 = int_to_ptr.vmem [resolvable:$true] %s2696
      %2702 = dma.vmem_to_hbm [thread:$0]  %s2697, 2048, %s6, [#allocation8], 128, 128, 8
    $region37: #{tpu_custom_call.1} parent=1 // pred_fallthru
      _
    // Predicated region
    $region38: #{tpu_custom_call.1} parent=1 // pred_check
      _
    $region39: #{tpu_custom_call.1} parent=1 // pred_check_branch
      %2704 = sbr.rel (0) target = $region41
    $region40: #{tpu_custom_call.1} parent=1 // pred_region
      %2705 = dma.done [#allocation8], 2048
    $region41: #{tpu_custom_call.1} parent=1 // pred_fallthru
      _
    %2706 = vsyncpa [#allocation8], 1

</llo_original>
